<compile_context>
chip_gen: v5e
topology: v5e:2x2
jax: 0.10.0
libtpu: 0.0.40
codegen_flags: <defaults>
</compile_context>

<pallas_src>
import numpy as np
import jax
import jax.numpy as jnp
from jax.experimental import pallas as pl
from jax.experimental.pallas import tpu as pltpu

BIGINT = 1e10
NUM_AA = 21  # len(AA_NAMES_1): 20 standard amino acids + 1 unknown type


def _round_up(x, m):
    return ((x + m - 1) // m) * m


def _vmem_limit_bytes(block_bytes, headroom=4 * 1024 * 1024):
    # 2x for double-buffered pipelining of every in/out block + headroom,
    # clamped to fit every generation (v7x physical VMEM = 64 MiB).
    total = 2 * int(sum(block_bytes)) + headroom
    return int(min(max(total, 16 * 1024 * 1024), 64 * 1024 * 1024))


# -----------------------------------------------------------------------------
# Kernel 1: AminoAcidEmbedding = residue embedding (one-hot matmul on MXU) +
#           SinusoidalPositionEmbedding, fused.  Row-tiled, lane-dense output.
# -----------------------------------------------------------------------------
def _node_embed_kernel(s_ref, rp_ref, w_ref, freq_ref, phase_ref, h_ref):
    R, _ = h_ref.shape
    num_aa = w_ref.shape[0]

    s = s_ref[...]                                               # [R, 1] int32
    onehot = (jax.lax.broadcasted_iota(jnp.int32, (R, num_aa), 1) == s)
    onehot = onehot.astype(jnp.float32)                          # [R, num_aa]
    res_embed = jnp.dot(onehot, w_ref[...],
                        preferred_element_type=jnp.float32)      # [R, E_pad]

    # Interleaved sin/cos PE via cos(x) = sin(x + pi/2): a single sin pass.
    ang = rp_ref[...] * freq_ref[...] + phase_ref[...]           # [R,1]*[1,E]+[1,E]
    h_ref[...] = res_embed + jnp.sin(ang)


def node_embedding(S, RP, W, *, row_tile=512):
    """Residue-type embedding + sinusoidal position embedding -> [N, E]."""
    N = S.shape[0]
    num_aa, E = W.shape
    E_pad = _round_up(E, 128)          # lane-dense output (unmasked stores)
    A_pad = _round_up(num_aa, 8)
    R = min(row_tile, _round_up(N, 8))
    Np = _round_up(N, R)

    # Padded operands (zero rows of W never get selected; padded rows sliced off).
    W_pad = jnp.zeros((A_pad, E_pad), jnp.float32).at[:num_aa, :E].set(
        W.astype(jnp.float32))
    S_pad = jnp.zeros((Np, 1), jnp.int32).at[:N, 0].set(S.astype(jnp.int32))
    RP_pad = jnp.zeros((Np, 1), jnp.float32).at[:N, 0].set(RP.astype(jnp.float32))

    # Compile-time frequency / phase rows (numpy -> constants under jit).
    col = np.arange(E_pad)
    in_range = col < E
    freq = np.where(in_range,
                    np.power(10000.0, -2.0 * (col // 2) / float(E)),
                    0.0).astype(np.float32)[None, :]
    phase = (np.where((col % 2 == 1) & in_range, np.pi / 2.0, 0.0)
             .astype(np.float32)[None, :])

    block_bytes = [R * 4, R * 4, A_pad * E_pad * 4, E_pad * 4, E_pad * 4,
                   R * E_pad * 4]

    Hp = pl.pallas_call(
        _node_embed_kernel,
        out_shape=jax.ShapeDtypeStruct((Np, E_pad), jnp.float32),
        grid=(Np // R,),
        in_specs=[
            pl.BlockSpec((R, 1), lambda i: (i, 0)),
            pl.BlockSpec((R, 1), lambda i: (i, 0)),
            pl.BlockSpec((A_pad, E_pad), lambda i: (0, 0)),
            pl.BlockSpec((1, E_pad), lambda i: (0, 0)),
            pl.BlockSpec((1, E_pad), lambda i: (0, 0)),
        ],
        out_specs=pl.BlockSpec((R, E_pad), lambda i: (i, 0)),
        compiler_params=pltpu.CompilerParams(
            dimension_semantics=("parallel",),
            vmem_limit_bytes=_vmem_limit_bytes(block_bytes)),
    )(S_pad, RP_pad, W_pad, jnp.asarray(freq), jnp.asarray(phase))
    return Hp[:N, :E]


# -----------------------------------------------------------------------------
# Kernel 2: tiled, masked SQUARED min-cross-channel distance matrix used by
#           _construct_knn.
#   D2[i, j] = min_{c1,c2} ||X[i,c1] - X[j,c2]||^2   if same bid & same seg
#   D2[i, j] = BIGINT                                 if invalid pair
#   D2[i, i] += BIGINT                                on the valid diagonal
# -----------------------------------------------------------------------------
def _knn_dist_kernel(xa_ref, xb_ref, bidr_ref, bidc_ref, segr_ref, segc_ref,
                     d_ref):
    TM, TN = d_ref.shape
    C = xa_ref.shape[1] // 3

    xa = xa_ref[...]                                  # [TM, C*3]  node-major
    xb = xb_ref[...]                                  # [C*3, TN]  lane-dense

    # Hoisted column-side slices and per-channel squared norms (once per tile).
    b_rows = [xb[k:k + 1, :] for k in range(3 * C)]   # each [1, TN]
    nb = [b_rows[3 * c] * b_rows[3 * c]
          + b_rows[3 * c + 1] * b_rows[3 * c + 1]
          + b_rows[3 * c + 2] * b_rows[3 * c + 2] for c in range(C)]

    d2min = None
    for c1 in range(C):                               # unrolled: C small & static
        a0 = xa[:, 3 * c1 + 0:3 * c1 + 1]             # [TM, 1] (hoisted per c1)
        a1 = xa[:, 3 * c1 + 1:3 * c1 + 2]
        a2 = xa[:, 3 * c1 + 2:3 * c1 + 3]
        na = a0 * a0 + a1 * a1 + a2 * a2              # [TM, 1]
        for c2 in range(C):
            b0, b1, b2 = b_rows[3 * c2], b_rows[3 * c2 + 1], b_rows[3 * c2 + 2]
            dot = a0 * b0 + a1 * b1 + a2 * b2         # [TM, TN]
            d2 = (na + nb[c2]) - (dot + dot)          # |a|^2 + |b|^2 - 2 a.b
            d2min = d2 if d2min is None else jnp.minimum(d2min, d2)

    valid = jnp.logical_and(bidr_ref[...] == bidc_ref[...],
                            segr_ref[...] == segc_ref[...])       # [TM, TN]

    row = pl.program_id(0) * TM + jax.lax.broadcasted_iota(jnp.int32, (TM, TN), 0)
    col = pl.program_id(1) * TN + jax.lax.broadcasted_iota(jnp.int32, (TM, TN), 1)
    diag = row == col

    d2 = jnp.where(valid, d2min, BIGINT)
    d2 = jnp.where(jnp.logical_and(valid, diag), d2 + BIGINT, d2)
    d_ref[...] = d2


def knn_sq_dist_matrix(X, Seg, bid, *, tm=256, tn=512):
    """Squared (sentinel-masked) pairwise distance matrix, shape [N, N]."""
    N, C, _ = X.shape
    TM = min(tm, _round_up(N, 8))
    TN = min(tn, _round_up(N, 128))
    Np_r = _round_up(N, TM)
    Np_c = _round_up(N, TN)

    Xf = X.astype(jnp.float32)
    xa = jnp.zeros((Np_r, C * 3), jnp.float32).at[:N].set(Xf.reshape(N, C * 3))
    xb = jnp.zeros((C * 3, Np_c), jnp.float32).at[:, :N].set(
        jnp.transpose(Xf, (1, 2, 0)).reshape(C * 3, N))
    # Pad bid with distinct sentinels so padded rows/cols are never "valid".
    bid_r = jnp.full((Np_r, 1), -1, jnp.int32).at[:N, 0].set(bid.astype(jnp.int32))
    bid_c = jnp.full((1, Np_c), -2, jnp.int32).at[0, :N].set(bid.astype(jnp.int32))
    seg_r = jnp.zeros((Np_r, 1), jnp.int32).at[:N, 0].set(Seg.astype(jnp.int32))
    seg_c = jnp.zeros((1, Np_c), jnp.int32).at[0, :N].set(Seg.astype(jnp.int32))

    block_bytes = [TM * C * 3 * 4, C * 3 * TN * 4, TM * 4, TN * 4, TM * 4, TN * 4,
                   TM * TN * 4]

    d2 = pl.pallas_call(
        _knn_dist_kernel,
        out_shape=jax.ShapeDtypeStruct((Np_r, Np_c), jnp.float32),
        grid=(Np_r // TM, Np_c // TN),
        in_specs=[
            pl.BlockSpec((TM, C * 3), lambda i, j: (i, 0)),
            pl.BlockSpec((C * 3, TN), lambda i, j: (0, j)),
            pl.BlockSpec((TM, 1), lambda i, j: (i, 0)),
            pl.BlockSpec((1, TN), lambda i, j: (0, j)),
            pl.BlockSpec((TM, 1), lambda i, j: (i, 0)),
            pl.BlockSpec((1, TN), lambda i, j: (0, j)),
        ],
        out_specs=pl.BlockSpec((TM, TN), lambda i, j: (i, j)),
        compiler_params=pltpu.CompilerParams(
            dimension_semantics=("parallel", "parallel"),
            vmem_limit_bytes=_vmem_limit_bytes(block_bytes)),
    )(xa, xb, bid_r, bid_c, seg_r, seg_c)
    return d2[:N, :N]


# -----------------------------------------------------------------------------
# Plain-JAX glue: backbone dihedral angles (3 per residue).
# -----------------------------------------------------------------------------
def _dihedral(p0, p1, p2, p3):
    b0 = p1 - p0
    b1 = p2 - p1
    b2 = p3 - p2
    n1 = jnp.cross(b0, b1)
    n2 = jnp.cross(b1, b2)
    b1n = b1 / (jnp.linalg.norm(b1, axis=-1, keepdims=True) + 1e-12)
    m1 = jnp.cross(n1, b1n)
    x = jnp.sum(n1 * n2, axis=-1)
    y = jnp.sum(m1 * n2, axis=-1)
    return jnp.arctan2(y, x)


def get_backbone_dihedral_angles(X):
    # TODO(synk): reference source of get_backbone_dihedral_angles not provided;
    # this is the standard phi/psi/omega backbone dihedral formula (3 dims,
    # matching feature_dim); it is applied across chain boundaries.
    n_at, ca_at, c_at = X[:, 0], X[:, 1], X[:, 2]
    N = X.shape[0]
    phi = jnp.zeros((N,), jnp.float32)
    psi = jnp.zeros((N,), jnp.float32)
    omega = jnp.zeros((N,), jnp.float32)
    if N > 1:
        phi = phi.at[1:].set(_dihedral(c_at[:-1], n_at[1:], ca_at[1:], c_at[1:]))
        psi = psi.at[:-1].set(_dihedral(n_at[:-1], ca_at[:-1], c_at[:-1], n_at[1:]))
        omega = omega.at[:-1].set(_dihedral(ca_at[:-1], c_at[:-1], n_at[1:], ca_at[1:]))
    return jnp.stack([phi, psi, omega], axis=-1)


# -----------------------------------------------------------------------------
# ComplexGraph.forward
# -----------------------------------------------------------------------------
def _complex_graph_core(X, S, RP, Seg, bid, W_embed, k_neighbors):
    """Jittable core: fixed output shapes, no host round-trips."""
    N = X.shape[0]

    # --- node_attr = [aa_embedding(S, RP), dihedral_embedding(X)] -------------
    H = node_embedding(S, RP, W_embed)                       # Pallas [N, E]
    dihed = get_backbone_dihedral_angles(X)                  # glue   [N, 3]
    node_attr = jnp.concatenate([H, dihed], axis=-1)         # [N, E + 3]

    # --- edges (_construct_edges / _construct_knn) ----------------------------
    # Squared distances: sqrt is monotone, so top-k and BIGINT sentinels behave
    # identically (validity check stays in squared/sentinel space).
    D2 = knn_sq_dist_matrix(X, Seg, bid)                     # Pallas [N, N]
    neg_vals, dst = jax.lax.top_k(-D2, k_neighbors)          # k smallest
    d2_neighbors = -neg_vals                                  # [N, K]
    src = jnp.broadcast_to(jnp.arange(N, dtype=jnp.int32)[:, None],
                           (N, k_neighbors))
    is_valid = (d2_neighbors < BIGINT).reshape(-1)            # [N*K]
    edges_full = jnp.stack([dst.reshape(-1).astype(jnp.int32),
                            src.reshape(-1)], axis=0)         # [2, N*K] fixed
    return node_attr, edges_full, is_valid


complex_graph_core = jax.jit(_complex_graph_core, static_argnames=("k_neighbors",))


def complex_graph_forward(X, S, RP, Seg, bid, W_embed, k_neighbors):
    node_attr, edges_full, is_valid = complex_graph_core(
        X, S, RP, Seg, bid, W_embed, k_neighbors=k_neighbors)
    # Variable-size compaction (data-dependent shape) happens once, outside jit.
    edges = edges_full[:, is_valid]

    # TODO(synk): pairwise_embedding depends on pairwise_dihedrals,
    # reletive_position_orientation, coord2radialplus, coord2nforce, vec2product
    # (and CA_INDEX) whose reference implementations are not provided; edge_attr
    # is not computed rather than faked.
    edge_attr = None
    return node_attr, edges, edge_attr


if __name__ == "__main__":
    key = jax.random.PRNGKey(0)
    N = 16          # residues (nodes)
    C = 4           # atoms per residue (N, CA, C, O)
    E = 32          # embed_size
    K = 4           # k_neighbors

    k1, k2, k3 = jax.random.split(key, 3)
    X = jax.random.normal(k1, (N, C, 3), jnp.float32) * 3.0
    S = jax.random.randint(k2, (N,), 0, NUM_AA, dtype=jnp.int32)
    RP = jnp.arange(N, dtype=jnp.float32)
    Seg = jnp.concatenate([jnp.zeros(N // 2, jnp.int32),
                           jnp.ones(N - N // 2, jnp.int32)])
    bid = jnp.zeros((N,), jnp.int32)                 # single complex

    # deterministic parameter init (nn.Embedding(num_aa_type, embed_size))
    W_embed = jax.random.normal(k3, (NUM_AA, E), jnp.float32) * 0.02

    node_attr, edges, edge_attr = complex_graph_forward(X, S, RP, Seg, bid,
                                                        W_embed, K)
    jax.block_until_ready(node_attr)
    jax.block_until_ready(edges)

    assert node_attr.shape == (N, E + 3)
    assert edges.shape[0] == 2

    # --- lightweight correctness checks against plain references --------------
    # Embedding + positional embedding
    col = np.arange(E)
    freq = np.power(10000.0, -2.0 * (col // 2) / float(E))
    ang = np.asarray(RP)[:, None] * freq[None, :]
    pe_ref = np.where(col[None, :] % 2 == 0, np.sin(ang), np.cos(ang))
    h_ref = np.asarray(W_embed)[np.asarray(S)] + pe_ref
    assert np.allclose(np.asarray(node_attr[:, :E]), h_ref, atol=1e-3), \
        "embedding mismatch"

    # Masked squared min-cross-channel distance matrix
    Xn = np.asarray(X).astype(np.float64)
    diff = Xn[:, None, :, None, :] - Xn[None, :, None, :, :]     # [N,N,C,C,3]
    d2_ref = np.min(np.sum(diff * diff, axis=-1), axis=(2, 3))   # [N,N]
    seg_np = np.asarray(Seg)
    bid_np = np.asarray(bid)
    valid = (bid_np[:, None] == bid_np[None, :]) & (seg_np[:, None] == seg_np[None, :])
    d2_ref = np.where(valid, d2_ref, BIGINT)
    d2_ref = np.where(valid & np.eye(N, dtype=bool), d2_ref + BIGINT, d2_ref)
    d2_kernel = np.asarray(knn_sq_dist_matrix(X, Seg, bid))
    assert np.allclose(d2_kernel, d2_ref, rtol=1e-3, atol=1e-2), \
        "knn distance matrix mismatch"

    # Edge invariants: no self loops, neighbors stay inside the same segment
    e = np.asarray(edges)
    assert np.all(e[0] != e[1])
    assert np.all(seg_np[e[0]] == seg_np[e[1]])

    print("KERNEL_OK")
</pallas_src>

<mosaic_0001>
module attributes {stable_mosaic.version = 11 : i64} {
  func.func @_node_embed_kernel(%arg0: i32, %arg1: memref<16x1xi32, #tpu.memory_space<vmem>>, %arg2: memref<16x1xf32, #tpu.memory_space<vmem>>, %arg3: memref<24x128xf32, #tpu.memory_space<vmem>>, %arg4: memref<1x128xf32, #tpu.memory_space<vmem>>, %arg5: memref<1x128xf32, #tpu.memory_space<vmem>>, %arg6: memref<16x128xf32, #tpu.memory_space<vmem>>) attributes {dimension_semantics = [#tpu.dimension_semantics<parallel>], iteration_bounds = array<i64: 1>, scalar_prefetch = 0 : i64, scratch_operands = 0 : i64, tpu.core_type = #tpu.core_type<tc>, window_params = [{transform_indices = @transform_0, window_bounds = array<i64: 16, 1>}, {transform_indices = @transform_1, window_bounds = array<i64: 16, 1>}, {pipeline_mode = #tpu.pipeline_mode<synchronous>, transform_indices = @transform_2, window_bounds = array<i64: 24, 128>}, {pipeline_mode = #tpu.pipeline_mode<synchronous>, transform_indices = @transform_3, window_bounds = array<i64: 1, 128>}, {pipeline_mode = #tpu.pipeline_mode<synchronous>, transform_indices = @transform_4, window_bounds = array<i64: 1, 128>}, {transform_indices = @transform_5, window_bounds = array<i64: 16, 128>}]} {
    %c0 = arith.constant 0 : index
    %c0_0 = arith.constant 0 : index
    %0 = vector.load %arg1[%c0, %c0_0] : memref<16x1xi32, #tpu.memory_space<vmem>>, vector<16x1xi32>
    %1 = tpu.iota {dimensions = array<i32: 1>} : vector<16x24xi32>
    %2 = vector.broadcast %0 : vector<16x1xi32> to vector<16x24xi32>
    %3 = arith.cmpi eq, %1, %2 : vector<16x24xi32>
    %4 = arith.extui %3 : vector<16x24xi1> to vector<16x24xi32>
    %5 = arith.sitofp %4 : vector<16x24xi32> to vector<16x24xf32>
    %c0_1 = arith.constant 0 : index
    %c0_2 = arith.constant 0 : index
    %6 = vector.load %arg3[%c0_1, %c0_2] : memref<24x128xf32, #tpu.memory_space<vmem>>, vector<24x128xf32>
    %cst = arith.constant dense<0.000000e+00> : vector<16x128xf32>
    %7 = tpu.matmul %5, %6, %cst {dimension_numbers = #tpu.dot_dimension_numbers<[1], [0], [0], [1], [0, 0, 1, 1], [], []>} : vector<16x24xf32>, vector<24x128xf32>, vector<16x128xf32> -> vector<16x128xf32>
    %c0_3 = arith.constant 0 : index
    %c0_4 = arith.constant 0 : index
    %8 = vector.load %arg2[%c0_3, %c0_4] : memref<16x1xf32, #tpu.memory_space<vmem>>, vector<16x1xf32>
    %c0_5 = arith.constant 0 : index
    %c0_6 = arith.constant 0 : index
    %9 = vector.load %arg4[%c0_5, %c0_6] : memref<1x128xf32, #tpu.memory_space<vmem>>, vector<1x128xf32>
    %10 = vector.broadcast %8 : vector<16x1xf32> to vector<16x128xf32>
    %11 = vector.broadcast %9 : vector<1x128xf32> to vector<16x128xf32>
    %12 = arith.mulf %10, %11 : vector<16x128xf32>
    %c0_7 = arith.constant 0 : index
    %c0_8 = arith.constant 0 : index
    %13 = vector.load %arg5[%c0_7, %c0_8] : memref<1x128xf32, #tpu.memory_space<vmem>>, vector<1x128xf32>
    %14 = vector.broadcast %13 : vector<1x128xf32> to vector<16x128xf32>
    %15 = arith.addf %12, %14 : vector<16x128xf32>
    %16 = math.sin %15 : vector<16x128xf32>
    %17 = arith.addf %7, %16 : vector<16x128xf32>
    %c0_9 = arith.constant 0 : index
    %c0_10 = arith.constant 0 : index
    %18 = vector.load %arg6[%c0_9, %c0_10] : memref<16x128xf32, #tpu.memory_space<vmem>>, vector<16x128xf32>
    tpu.vector_store %arg6[%c0_9, %c0_10], %17 {strides = array<i32>} : memref<16x128xf32, #tpu.memory_space<vmem>>, vector<16x128xf32>,
    return
  }
  func.func @transform_0(%arg0: i32) -> (i32, i32) {
    %c0_i32 = arith.constant 0 : i32
    %c0_i32_0 = arith.constant 0 : i32
    return %arg0, %c0_i32 : i32, i32
  }
  func.func @transform_1(%arg0: i32) -> (i32, i32) {
    %c0_i32 = arith.constant 0 : i32
    %c0_i32_0 = arith.constant 0 : i32
    return %arg0, %c0_i32 : i32, i32
  }
  func.func @transform_2(%arg0: i32) -> (i32, i32) {
    %c0_i32 = arith.constant 0 : i32
    %c0_i32_0 = arith.constant 0 : i32
    %c0_i32_1 = arith.constant 0 : i32
    return %c0_i32, %c0_i32_0 : i32, i32
  }
  func.func @transform_3(%arg0: i32) -> (i32, i32) {
    %c0_i32 = arith.constant 0 : i32
    %c0_i32_0 = arith.constant 0 : i32
    %c0_i32_1 = arith.constant 0 : i32
    return %c0_i32, %c0_i32_0 : i32, i32
  }
  func.func @transform_4(%arg0: i32) -> (i32, i32) {
    %c0_i32 = arith.constant 0 : i32
    %c0_i32_0 = arith.constant 0 : i32
    %c0_i32_1 = arith.constant 0 : i32
    return %c0_i32, %c0_i32_0 : i32, i32
  }
  func.func @transform_5(%arg0: i32) -> (i32, i32) {
    %c0_i32 = arith.constant 0 : i32
    %c0_i32_0 = arith.constant 0 : i32
    return %arg0, %c0_i32 : i32, i32
  }
}

module attributes {stable_mosaic.version = 11 : i64} {
  func.func @_knn_dist_kernel(%arg0: i32, %arg1: i32, %arg2: memref<16x12xf32, #tpu.memory_space<vmem>>, %arg3: memref<12x128xf32, #tpu.memory_space<vmem>>, %arg4: memref<16x1xi32, #tpu.memory_space<vmem>>, %arg5: memref<1x128xi32, #tpu.memory_space<vmem>>, %arg6: memref<16x1xi32, #tpu.memory_space<vmem>>, %arg7: memref<1x128xi32, #tpu.memory_space<vmem>>, %arg8: memref<16x128xf32, #tpu.memory_space<vmem>>) attributes {dimension_semantics = [#tpu.dimension_semantics<parallel>, #tpu.dimension_semantics<parallel>], iteration_bounds = array<i64: 1, 1>, scalar_prefetch = 0 : i64, scratch_operands = 0 : i64, tpu.core_type = #tpu.core_type<tc>, window_params = [{transform_indices = @transform_0, window_bounds = array<i64: 16, 12>}, {transform_indices = @transform_1, window_bounds = array<i64: 12, 128>}, {transform_indices = @transform_2, window_bounds = array<i64: 16, 1>}, {transform_indices = @transform_3, window_bounds = array<i64: 1, 128>}, {transform_indices = @transform_4, window_bounds = array<i64: 16, 1>}, {transform_indices = @transform_5, window_bounds = array<i64: 1, 128>}, {transform_indices = @transform_6, window_bounds = array<i64: 16, 128>}]} {
    %c0 = arith.constant 0 : index
    %c0_0 = arith.constant 0 : index
    %0 = vector.load %arg2[%c0, %c0_0] : memref<16x12xf32, #tpu.memory_space<vmem>>, vector<16x12xf32>
    %c0_1 = arith.constant 0 : index
    %c0_2 = arith.constant 0 : index
    %1 = vector.load %arg3[%c0_1, %c0_2] : memref<12x128xf32, #tpu.memory_space<vmem>>, vector<12x128xf32>
    %2 = vector.extract_strided_slice %1 {offsets = [0, 0], sizes = [1, 128], strides = [1, 1]} : vector<12x128xf32> to vector<1x128xf32>
    %3 = vector.extract_strided_slice %1 {offsets = [1, 0], sizes = [1, 128], strides = [1, 1]} : vector<12x128xf32> to vector<1x128xf32>
    %4 = vector.extract_strided_slice %1 {offsets = [2, 0], sizes = [1, 128], strides = [1, 1]} : vector<12x128xf32> to vector<1x128xf32>
    %5 = vector.extract_strided_slice %1 {offsets = [3, 0], sizes = [1, 128], strides = [1, 1]} : vector<12x128xf32> to vector<1x128xf32>
    %6 = vector.extract_strided_slice %1 {offsets = [4, 0], sizes = [1, 128], strides = [1, 1]} : vector<12x128xf32> to vector<1x128xf32>
    %7 = vector.extract_strided_slice %1 {offsets = [5, 0], sizes = [1, 128], strides = [1, 1]} : vector<12x128xf32> to vector<1x128xf32>
    %8 = vector.extract_strided_slice %1 {offsets = [6, 0], sizes = [1, 128], strides = [1, 1]} : vector<12x128xf32> to vector<1x128xf32>
    %9 = vector.extract_strided_slice %1 {offsets = [7, 0], sizes = [1, 128], strides = [1, 1]} : vector<12x128xf32> to vector<1x128xf32>
    %10 = vector.extract_strided_slice %1 {offsets = [8, 0], sizes = [1, 128], strides = [1, 1]} : vector<12x128xf32> to vector<1x128xf32>
    %11 = vector.extract_strided_slice %1 {offsets = [9, 0], sizes = [1, 128], strides = [1, 1]} : vector<12x128xf32> to vector<1x128xf32>
    %12 = vector.extract_strided_slice %1 {offsets = [10, 0], sizes = [1, 128], strides = [1, 1]} : vector<12x128xf32> to vector<1x128xf32>
    %13 = vector.extract_strided_slice %1 {offsets = [11, 0], sizes = [1, 128], strides = [1, 1]} : vector<12x128xf32> to vector<1x128xf32>
    %14 = arith.mulf %2, %2 : vector<1x128xf32>
    %15 = arith.mulf %3, %3 : vector<1x128xf32>
    %16 = arith.addf %14, %15 : vector<1x128xf32>
    %17 = arith.mulf %4, %4 : vector<1x128xf32>
    %18 = arith.addf %16, %17 : vector<1x128xf32>
    %19 = arith.mulf %5, %5 : vector<1x128xf32>
    %20 = arith.mulf %6, %6 : vector<1x128xf32>
    %21 = arith.addf %19, %20 : vector<1x128xf32>
    %22 = arith.mulf %7, %7 : vector<1x128xf32>
    %23 = arith.addf %21, %22 : vector<1x128xf32>
    %24 = arith.mulf %8, %8 : vector<1x128xf32>
    %25 = arith.mulf %9, %9 : vector<1x128xf32>
    %26 = arith.addf %24, %25 : vector<1x128xf32>
    %27 = arith.mulf %10, %10 : vector<1x128xf32>
    %28 = arith.addf %26, %27 : vector<1x128xf32>
    %29 = arith.mulf %11, %11 : vector<1x128xf32>
    %30 = arith.mulf %12, %12 : vector<1x128xf32>
    %31 = arith.addf %29, %30 : vector<1x128xf32>
    %32 = arith.mulf %13, %13 : vector<1x128xf32>
    %33 = arith.addf %31, %32 : vector<1x128xf32>
    %34 = vector.extract_strided_slice %0 {offsets = [0, 0], sizes = [16, 1], strides = [1, 1]} : vector<16x12xf32> to vector<16x1xf32>
    %35 = vector.extract_strided_slice %0 {offsets = [0, 1], sizes = [16, 1], strides = [1, 1]} : vector<16x12xf32> to vector<16x1xf32>
    %36 = vector.extract_strided_slice %0 {offsets = [0, 2], sizes = [16, 1], strides = [1, 1]} : vector<16x12xf32> to vector<16x1xf32>
    %37 = arith.mulf %34, %34 : vector<16x1xf32>
    %38 = arith.mulf %35, %35 : vector<16x1xf32>
    %39 = arith.addf %37, %38 : vector<16x1xf32>
    %40 = arith.mulf %36, %36 : vector<16x1xf32>
    %41 = arith.addf %39, %40 : vector<16x1xf32>
    %42 = vector.broadcast %34 : vector<16x1xf32> to vector<16x128xf32>
    %43 = vector.broadcast %2 : vector<1x128xf32> to vector<16x128xf32>
    %44 = arith.mulf %42, %43 : vector<16x128xf32>
    %45 = vector.broadcast %35 : vector<16x1xf32> to vector<16x128xf32>
    %46 = vector.broadcast %3 : vector<1x128xf32> to vector<16x128xf32>
    %47 = arith.mulf %45, %46 : vector<16x128xf32>
    %48 = arith.addf %44, %47 : vector<16x128xf32>
    %49 = vector.broadcast %36 : vector<16x1xf32> to vector<16x128xf32>
    %50 = vector.broadcast %4 : vector<1x128xf32> to vector<16x128xf32>
    %51 = arith.mulf %49, %50 : vector<16x128xf32>
    %52 = arith.addf %48, %51 : vector<16x128xf32>
    %53 = vector.broadcast %41 : vector<16x1xf32> to vector<16x128xf32>
    %54 = vector.broadcast %18 : vector<1x128xf32> to vector<16x128xf32>
    %55 = arith.addf %53, %54 : vector<16x128xf32>
    %56 = arith.addf %52, %52 : vector<16x128xf32>
    %57 = arith.subf %55, %56 : vector<16x128xf32>
    %58 = vector.broadcast %34 : vector<16x1xf32> to vector<16x128xf32>
    %59 = vector.broadcast %5 : vector<1x128xf32> to vector<16x128xf32>
    %60 = arith.mulf %58, %59 : vector<16x128xf32>
    %61 = vector.broadcast %35 : vector<16x1xf32> to vector<16x128xf32>
    %62 = vector.broadcast %6 : vector<1x128xf32> to vector<16x128xf32>
    %63 = arith.mulf %61, %62 : vector<16x128xf32>
    %64 = arith.addf %60, %63 : vector<16x128xf32>
    %65 = vector.broadcast %36 : vector<16x1xf32> to vector<16x128xf32>
    %66 = vector.broadcast %7 : vector<1x128xf32> to vector<16x128xf32>
    %67 = arith.mulf %65, %66 : vector<16x128xf32>
    %68 = arith.addf %64, %67 : vector<16x128xf32>
    %69 = vector.broadcast %41 : vector<16x1xf32> to vector<16x128xf32>
    %70 = vector.broadcast %23 : vector<1x128xf32> to vector<16x128xf32>
    %71 = arith.addf %69, %70 : vector<16x128xf32>
    %72 = arith.addf %68, %68 : vector<16x128xf32>
    %73 = arith.subf %71, %72 : vector<16x128xf32>
    %74 = arith.minimumf %57, %73 : vector<16x128xf32>
    %75 = vector.broadcast %34 : vector<16x1xf32> to vector<16x128xf32>
    %76 = vector.broadcast %8 : vector<1x128xf32> to vector<16x128xf32>
    %77 = arith.mulf %75, %76 : vector<16x128xf32>
    %78 = vector.broadcast %35 : vector<16x1xf32> to vector<16x128xf32>
    %79 = vector.broadcast %9 : vector<1x128xf32> to vector<16x128xf32>
    %80 = arith.mulf %78, %79 : vector<16x128xf32>
    %81 = arith.addf %77, %80 : vector<16x128xf32>
    %82 = vector.broadcast %36 : vector<16x1xf32> to vector<16x128xf32>
    %83 = vector.broadcast %10 : vector<1x128xf32> to vector<16x128xf32>
    %84 = arith.mulf %82, %83 : vector<16x128xf32>
    %85 = arith.addf %81, %84 : vector<16x128xf32>
    %86 = vector.broadcast %41 : vector<16x1xf32> to vector<16x128xf32>
    %87 = vector.broadcast %28 : vector<1x128xf32> to vector<16x128xf32>
    %88 = arith.addf %86, %87 : vector<16x128xf32>
    %89 = arith.addf %85, %85 : vector<16x128xf32>
    %90 = arith.subf %88, %89 : vector<16x128xf32>
    %91 = arith.minimumf %74, %90 : vector<16x128xf32>
    %92 = vector.broadcast %34 : vector<16x1xf32> to vector<16x128xf32>
    %93 = vector.broadcast %11 : vector<1x128xf32> to vector<16x128xf32>
    %94 = arith.mulf %92, %93 : vector<16x128xf32>
    %95 = vector.broadcast %35 : vector<16x1xf32> to vector<16x128xf32>
    %96 = vector.broadcast %12 : vector<1x128xf32> to vector<16x128xf32>
    %97 = arith.mulf %95, %96 : vector<16x128xf32>
    %98 = arith.addf %94, %97 : vector<16x128xf32>
    %99 = vector.broadcast %36 : vector<16x1xf32> to vector<16x128xf32>
    %100 = vector.broadcast %13 : vector<1x128xf32> to vector<16x128xf32>
    %101 = arith.mulf %99, %100 : vector<16x128xf32>
    %102 = arith.addf %98, %101 : vector<16x128xf32>
    %103 = vector.broadcast %41 : vector<16x1xf32> to vector<16x128xf32>
    %104 = vector.broadcast %33 : vector<1x128xf32> to vector<16x128xf32>
    %105 = arith.addf %103, %104 : vector<16x128xf32>
    %106 = arith.addf %102, %102 : vector<16x128xf32>
    %107 = arith.subf %105, %106 : vector<16x128xf32>
    %108 = arith.minimumf %91, %107 : vector<16x128xf32>
    %109 = vector.extract_strided_slice %0 {offsets = [0, 3], sizes = [16, 1], strides = [1, 1]} : vector<16x12xf32> to vector<16x1xf32>
    %110 = vector.extract_strided_slice %0 {offsets = [0, 4], sizes = [16, 1], strides = [1, 1]} : vector<16x12xf32> to vector<16x1xf32>
    %111 = vector.extract_strided_slice %0 {offsets = [0, 5], sizes = [16, 1], strides = [1, 1]} : vector<16x12xf32> to vector<16x1xf32>
    %112 = arith.mulf %109, %109 : vector<16x1xf32>
    %113 = arith.mulf %110, %110 : vector<16x1xf32>
    %114 = arith.addf %112, %113 : vector<16x1xf32>
    %115 = arith.mulf %111, %111 : vector<16x1xf32>
    %116 = arith.addf %114, %115 : vector<16x1xf32>
    %117 = vector.broadcast %109 : vector<16x1xf32> to vector<16x128xf32>
    %118 = vector.broadcast %2 : vector<1x128xf32> to vector<16x128xf32>
    %119 = arith.mulf %117, %118 : vector<16x128xf32>
    %120 = vector.broadcast %110 : vector<16x1xf32> to vector<16x128xf32>
    %121 = vector.broadcast %3 : vector<1x128xf32> to vector<16x128xf32>
    %122 = arith.mulf %120, %121 : vector<16x128xf32>
    %123 = arith.addf %119, %122 : vector<16x128xf32>
    %124 = vector.broadcast %111 : vector<16x1xf32> to vector<16x128xf32>
    %125 = vector.broadcast %4 : vector<1x128xf32> to vector<16x128xf32>
    %126 = arith.mulf %124, %125 : vector<16x128xf32>
    %127 = arith.addf %123, %126 : vector<16x128xf32>
    %128 = vector.broadcast %116 : vector<16x1xf32> to vector<16x128xf32>
    %129 = vector.broadcast %18 : vector<1x128xf32> to vector<16x128xf32>
    %130 = arith.addf %128, %129 : vector<16x128xf32>
    %131 = arith.addf %127, %127 : vector<16x128xf32>
    %132 = arith.subf %130, %131 : vector<16x128xf32>
    %133 = arith.minimumf %108, %132 : vector<16x128xf32>
    %134 = vector.broadcast %109 : vector<16x1xf32> to vector<16x128xf32>
    %135 = vector.broadcast %5 : vector<1x128xf32> to vector<16x128xf32>
    %136 = arith.mulf %134, %135 : vector<16x128xf32>
    %137 = vector.broadcast %110 : vector<16x1xf32> to vector<16x128xf32>
    %138 = vector.broadcast %6 : vector<1x128xf32> to vector<16x128xf32>
    %139 = arith.mulf %137, %138 : vector<16x128xf32>
    %140 = arith.addf %136, %139 : vector<16x128xf32>
    %141 = vector.broadcast %111 : vector<16x1xf32> to vector<16x128xf32>
    %142 = vector.broadcast %7 : vector<1x128xf32> to vector<16x128xf32>
    %143 = arith.mulf %141, %142 : vector<16x128xf32>
    %144 = arith.addf %140, %143 : vector<16x128xf32>
    %145 = vector.broadcast %116 : vector<16x1xf32> to vector<16x128xf32>
    %146 = vector.broadcast %23 : vector<1x128xf32> to vector<16x128xf32>
    %147 = arith.addf %145, %146 : vector<16x128xf32>
    %148 = arith.addf %144, %144 : vector<16x128xf32>
    %149 = arith.subf %147, %148 : vector<16x128xf32>
    %150 = arith.minimumf %133, %149 : vector<16x128xf32>
    %151 = vector.broadcast %109 : vector<16x1xf32> to vector<16x128xf32>
    %152 = vector.broadcast %8 : vector<1x128xf32> to vector<16x128xf32>
    %153 = arith.mulf %151, %152 : vector<16x128xf32>
    %154 = vector.broadcast %110 : vector<16x1xf32> to vector<16x128xf32>
    %155 = vector.broadcast %9 : vector<1x128xf32> to vector<16x128xf32>
    %156 = arith.mulf %154, %155 : vector<16x128xf32>
    %157 = arith.addf %153, %156 : vector<16x128xf32>
    %158 = vector.broadcast %111 : vector<16x1xf32> to vector<16x128xf32>
    %159 = vector.broadcast %10 : vector<1x128xf32> to vector<16x128xf32>
    %160 = arith.mulf %158, %159 : vector<16x128xf32>
    %161 = arith.addf %157, %160 : vector<16x128xf32>
    %162 = vector.broadcast %116 : vector<16x1xf32> to vector<16x128xf32>
    %163 = vector.broadcast %28 : vector<1x128xf32> to vector<16x128xf32>
    %164 = arith.addf %162, %163 : vector<16x128xf32>
    %165 = arith.addf %161, %161 : vector<16x128xf32>
    %166 = arith.subf %164, %165 : vector<16x128xf32>
    %167 = arith.minimumf %150, %166 : vector<16x128xf32>
    %168 = vector.broadcast %109 : vector<16x1xf32> to vector<16x128xf32>
    %169 = vector.broadcast %11 : vector<1x128xf32> to vector<16x128xf32>
    %170 = arith.mulf %168, %169 : vector<16x128xf32>
    %171 = vector.broadcast %110 : vector<16x1xf32> to vector<16x128xf32>
    %172 = vector.broadcast %12 : vector<1x128xf32> to vector<16x128xf32>
    %173 = arith.mulf %171, %172 : vector<16x128xf32>
    %174 = arith.addf %170, %173 : vector<16x128xf32>
    %175 = vector.broadcast %111 : vector<16x1xf32> to vector<16x128xf32>
    %176 = vector.broadcast %13 : vector<1x128xf32> to vector<16x128xf32>
    %177 = arith.mulf %175, %176 : vector<16x128xf32>
    %178 = arith.addf %174, %177 : vector<16x128xf32>
    %179 = vector.broadcast %116 : vector<16x1xf32> to vector<16x128xf32>
    %180 = vector.broadcast %33 : vector<1x128xf32> to vector<16x128xf32>
    %181 = arith.addf %179, %180 : vector<16x128xf32>
    %182 = arith.addf %178, %178 : vector<16x128xf32>
    %183 = arith.subf %181, %182 : vector<16x128xf32>
    %184 = arith.minimumf %167, %183 : vector<16x128xf32>
    %185 = vector.extract_strided_slice %0 {offsets = [0, 6], sizes = [16, 1], strides = [1, 1]} : vector<16x12xf32> to vector<16x1xf32>
    %186 = vector.extract_strided_slice %0 {offsets = [0, 7], sizes = [16, 1], strides = [1, 1]} : vector<16x12xf32> to vector<16x1xf32>
    %187 = vector.extract_strided_slice %0 {offsets = [0, 8], sizes = [16, 1], strides = [1, 1]} : vector<16x12xf32> to vector<16x1xf32>
    %188 = arith.mulf %185, %185 : vector<16x1xf32>
    %189 = arith.mulf %186, %186 : vector<16x1xf32>
    %190 = arith.addf %188, %189 : vector<16x1xf32>
    %191 = arith.mulf %187, %187 : vector<16x1xf32>
    %192 = arith.addf %190, %191 : vector<16x1xf32>
    %193 = vector.broadcast %185 : vector<16x1xf32> to vector<16x128xf32>
    %194 = vector.broadcast %2 : vector<1x128xf32> to vector<16x128xf32>
    %195 = arith.mulf %193, %194 : vector<16x128xf32>
    %196 = vector.broadcast %186 : vector<16x1xf32> to vector<16x128xf32>
    %197 = vector.broadcast %3 : vector<1x128xf32> to vector<16x128xf32>
    %198 = arith.mulf %196, %197 : vector<16x128xf32>
    %199 = arith.addf %195, %198 : vector<16x128xf32>
    %200 = vector.broadcast %187 : vector<16x1xf32> to vector<16x128xf32>
    %201 = vector.broadcast %4 : vector<1x128xf32> to vector<16x128xf32>
    %202 = arith.mulf %200, %201 : vector<16x128xf32>
    %203 = arith.addf %199, %202 : vector<16x128xf32>
    %204 = vector.broadcast %192 : vector<16x1xf32> to vector<16x128xf32>
    %205 = vector.broadcast %18 : vector<1x128xf32> to vector<16x128xf32>
    %206 = arith.addf %204, %205 : vector<16x128xf32>
    %207 = arith.addf %203, %203 : vector<16x128xf32>
    %208 = arith.subf %206, %207 : vector<16x128xf32>
    %209 = arith.minimumf %184, %208 : vector<16x128xf32>
    %210 = vector.broadcast %185 : vector<16x1xf32> to vector<16x128xf32>
    %211 = vector.broadcast %5 : vector<1x128xf32> to vector<16x128xf32>
    %212 = arith.mulf %210, %211 : vector<16x128xf32>
    %213 = vector.broadcast %186 : vector<16x1xf32> to vector<16x128xf32>
    %214 = vector.broadcast %6 : vector<1x128xf32> to vector<16x128xf32>
    %215 = arith.mulf %213, %214 : vector<16x128xf32>
    %216 = arith.addf %212, %215 : vector<16x128xf32>
    %217 = vector.broadcast %187 : vector<16x1xf32> to vector<16x128xf32>
    %218 = vector.broadcast %7 : vector<1x128xf32> to vector<16x128xf32>
    %219 = arith.mulf %217, %218 : vector<16x128xf32>
    %220 = arith.addf %216, %219 : vector<16x128xf32>
    %221 = vector.broadcast %192 : vector<16x1xf32> to vector<16x128xf32>
    %222 = vector.broadcast %23 : vector<1x128xf32> to vector<16x128xf32>
    %223 = arith.addf %221, %222 : vector<16x128xf32>
    %224 = arith.addf %220, %220 : vector<16x128xf32>
    %225 = arith.subf %223, %224 : vector<16x128xf32>
    %226 = arith.minimumf %209, %225 : vector<16x128xf32>
    %227 = vector.broadcast %185 : vector<16x1xf32> to vector<16x128xf32>
    %228 = vector.broadcast %8 : vector<1x128xf32> to vector<16x128xf32>
    %229 = arith.mulf %227, %228 : vector<16x128xf32>
    %230 = vector.broadcast %186 : vector<16x1xf32> to vector<16x128xf32>
    %231 = vector.broadcast %9 : vector<1x128xf32> to vector<16x128xf32>
    %232 = arith.mulf %230, %231 : vector<16x128xf32>
    %233 = arith.addf %229, %232 : vector<16x128xf32>
    %234 = vector.broadcast %187 : vector<16x1xf32> to vector<16x128xf32>
    %235 = vector.broadcast %10 : vector<1x128xf32> to vector<16x128xf32>
    %236 = arith.mulf %234, %235 : vector<16x128xf32>
    %237 = arith.addf %233, %236 : vector<16x128xf32>
    %238 = vector.broadcast %192 : vector<16x1xf32> to vector<16x128xf32>
    %239 = vector.broadcast %28 : vector<1x128xf32> to vector<16x128xf32>
    %240 = arith.addf %238, %239 : vector<16x128xf32>
    %241 = arith.addf %237, %237 : vector<16x128xf32>
    %242 = arith.subf %240, %241 : vector<16x128xf32>
    %243 = arith.minimumf %226, %242 : vector<16x128xf32>
    %244 = vector.broadcast %185 : vector<16x1xf32> to vector<16x128xf32>
    %245 = vector.broadcast %11 : vector<1x128xf32> to vector<16x128xf32>
    %246 = arith.mulf %244, %245 : vector<16x128xf32>
    %247 = vector.broadcast %186 : vector<16x1xf32> to vector<16x128xf32>
    %248 = vector.broadcast %12 : vector<1x128xf32> to vector<16x128xf32>
    %249 = arith.mulf %247, %248 : vector<16x128xf32>
    %250 = arith.addf %246, %249 : vector<16x128xf32>
    %251 = vector.broadcast %187 : vector<16x1xf32> to vector<16x128xf32>
    %252 = vector.broadcast %13 : vector<1x128xf32> to vector<16x128xf32>
    %253 = arith.mulf %251, %252 : vector<16x128xf32>
    %254 = arith.addf %250, %253 : vector<16x128xf32>
    %255 = vector.broadcast %192 : vector<16x1xf32> to vector<16x128xf32>
    %256 = vector.broadcast %33 : vector<1x128xf32> to vector<16x128xf32>
    %257 = arith.addf %255, %256 : vector<16x128xf32>
    %258 = arith.addf %254, %254 : vector<16x128xf32>
    %259 = arith.subf %257, %258 : vector<16x128xf32>
    %260 = arith.minimumf %243, %259 : vector<16x128xf32>
    %261 = vector.extract_strided_slice %0 {offsets = [0, 9], sizes = [16, 1], strides = [1, 1]} : vector<16x12xf32> to vector<16x1xf32>
    %262 = vector.extract_strided_slice %0 {offsets = [0, 10], sizes = [16, 1], strides = [1, 1]} : vector<16x12xf32> to vector<16x1xf32>
    %263 = vector.extract_strided_slice %0 {offsets = [0, 11], sizes = [16, 1], strides = [1, 1]} : vector<16x12xf32> to vector<16x1xf32>
    %264 = arith.mulf %261, %261 : vector<16x1xf32>
    %265 = arith.mulf %262, %262 : vector<16x1xf32>
    %266 = arith.addf %264, %265 : vector<16x1xf32>
    %267 = arith.mulf %263, %263 : vector<16x1xf32>
    %268 = arith.addf %266, %267 : vector<16x1xf32>
    %269 = vector.broadcast %261 : vector<16x1xf32> to vector<16x128xf32>
    %270 = vector.broadcast %2 : vector<1x128xf32> to vector<16x128xf32>
    %271 = arith.mulf %269, %270 : vector<16x128xf32>
    %272 = vector.broadcast %262 : vector<16x1xf32> to vector<16x128xf32>
    %273 = vector.broadcast %3 : vector<1x128xf32> to vector<16x128xf32>
    %274 = arith.mulf %272, %273 : vector<16x128xf32>
    %275 = arith.addf %271, %274 : vector<16x128xf32>
    %276 = vector.broadcast %263 : vector<16x1xf32> to vector<16x128xf32>
    %277 = vector.broadcast %4 : vector<1x128xf32> to vector<16x128xf32>
    %278 = arith.mulf %276, %277 : vector<16x128xf32>
    %279 = arith.addf %275, %278 : vector<16x128xf32>
    %280 = vector.broadcast %268 : vector<16x1xf32> to vector<16x128xf32>
    %281 = vector.broadcast %18 : vector<1x128xf32> to vector<16x128xf32>
    %282 = arith.addf %280, %281 : vector<16x128xf32>
    %283 = arith.addf %279, %279 : vector<16x128xf32>
    %284 = arith.subf %282, %283 : vector<16x128xf32>
    %285 = arith.minimumf %260, %284 : vector<16x128xf32>
    %286 = vector.broadcast %261 : vector<16x1xf32> to vector<16x128xf32>
    %287 = vector.broadcast %5 : vector<1x128xf32> to vector<16x128xf32>
    %288 = arith.mulf %286, %287 : vector<16x128xf32>
    %289 = vector.broadcast %262 : vector<16x1xf32> to vector<16x128xf32>
    %290 = vector.broadcast %6 : vector<1x128xf32> to vector<16x128xf32>
    %291 = arith.mulf %289, %290 : vector<16x128xf32>
    %292 = arith.addf %288, %291 : vector<16x128xf32>
    %293 = vector.broadcast %263 : vector<16x1xf32> to vector<16x128xf32>
    %294 = vector.broadcast %7 : vector<1x128xf32> to vector<16x128xf32>
    %295 = arith.mulf %293, %294 : vector<16x128xf32>
    %296 = arith.addf %292, %295 : vector<16x128xf32>
    %297 = vector.broadcast %268 : vector<16x1xf32> to vector<16x128xf32>
    %298 = vector.broadcast %23 : vector<1x128xf32> to vector<16x128xf32>
    %299 = arith.addf %297, %298 : vector<16x128xf32>
    %300 = arith.addf %296, %296 : vector<16x128xf32>
    %301 = arith.subf %299, %300 : vector<16x128xf32>
    %302 = arith.minimumf %285, %301 : vector<16x128xf32>
    %303 = vector.broadcast %261 : vector<16x1xf32> to vector<16x128xf32>
    %304 = vector.broadcast %8 : vector<1x128xf32> to vector<16x128xf32>
    %305 = arith.mulf %303, %304 : vector<16x128xf32>
    %306 = vector.broadcast %262 : vector<16x1xf32> to vector<16x128xf32>
    %307 = vector.broadcast %9 : vector<1x128xf32> to vector<16x128xf32>
    %308 = arith.mulf %306, %307 : vector<16x128xf32>
    %309 = arith.addf %305, %308 : vector<16x128xf32>
    %310 = vector.broadcast %263 : vector<16x1xf32> to vector<16x128xf32>
    %311 = vector.broadcast %10 : vector<1x128xf32> to vector<16x128xf32>
    %312 = arith.mulf %310, %311 : vector<16x128xf32>
    %313 = arith.addf %309, %312 : vector<16x128xf32>
    %314 = vector.broadcast %268 : vector<16x1xf32> to vector<16x128xf32>
    %315 = vector.broadcast %28 : vector<1x128xf32> to vector<16x128xf32>
    %316 = arith.addf %314, %315 : vector<16x128xf32>
    %317 = arith.addf %313, %313 : vector<16x128xf32>
    %318 = arith.subf %316, %317 : vector<16x128xf32>
    %319 = arith.minimumf %302, %318 : vector<16x128xf32>
    %320 = vector.broadcast %261 : vector<16x1xf32> to vector<16x128xf32>
    %321 = vector.broadcast %11 : vector<1x128xf32> to vector<16x128xf32>
    %322 = arith.mulf %320, %321 : vector<16x128xf32>
    %323 = vector.broadcast %262 : vector<16x1xf32> to vector<16x128xf32>
    %324 = vector.broadcast %12 : vector<1x128xf32> to vector<16x128xf32>
    %325 = arith.mulf %323, %324 : vector<16x128xf32>
    %326 = arith.addf %322, %325 : vector<16x128xf32>
    %327 = vector.broadcast %263 : vector<16x1xf32> to vector<16x128xf32>
    %328 = vector.broadcast %13 : vector<1x128xf32> to vector<16x128xf32>
    %329 = arith.mulf %327, %328 : vector<16x128xf32>
    %330 = arith.addf %326, %329 : vector<16x128xf32>
    %331 = vector.broadcast %268 : vector<16x1xf32> to vector<16x128xf32>
    %332 = vector.broadcast %33 : vector<1x128xf32> to vector<16x128xf32>
    %333 = arith.addf %331, %332 : vector<16x128xf32>
    %334 = arith.addf %330, %330 : vector<16x128xf32>
    %335 = arith.subf %333, %334 : vector<16x128xf32>
    %336 = arith.minimumf %319, %335 : vector<16x128xf32>
    %c0_3 = arith.constant 0 : index
    %c0_4 = arith.constant 0 : index
    %337 = vector.load %arg4[%c0_3, %c0_4] : memref<16x1xi32, #tpu.memory_space<vmem>>, vector<16x1xi32>
    %c0_5 = arith.constant 0 : index
    %c0_6 = arith.constant 0 : index
    %338 = vector.load %arg5[%c0_5, %c0_6] : memref<1x128xi32, #tpu.memory_space<vmem>>, vector<1x128xi32>
    %339 = vector.broadcast %337 : vector<16x1xi32> to vector<16x128xi32>
    %340 = vector.broadcast %338 : vector<1x128xi32> to vector<16x128xi32>
    %341 = arith.cmpi eq, %339, %340 : vector<16x128xi32>
    %c0_7 = arith.constant 0 : index
    %c0_8 = arith.constant 0 : index
    %342 = vector.load %arg6[%c0_7, %c0_8] : memref<16x1xi32, #tpu.memory_space<vmem>>, vector<16x1xi32>
    %c0_9 = arith.constant 0 : index
    %c0_10 = arith.constant 0 : index
    %343 = vector.load %arg7[%c0_9, %c0_10] : memref<1x128xi32, #tpu.memory_space<vmem>>, vector<1x128xi32>
    %344 = vector.broadcast %342 : vector<16x1xi32> to vector<16x128xi32>
    %345 = vector.broadcast %343 : vector<1x128xi32> to vector<16x128xi32>
    %346 = arith.cmpi eq, %344, %345 : vector<16x128xi32>
    %347 = arith.andi %341, %346 : vector<16x128xi1>
    %c16_i32 = arith.constant 16 : i32
    %348 = arith.muli %arg0, %c16_i32 : i32
    %349 = tpu.iota {dimensions = array<i32: 0>} : vector<16x128xi32>
    %350 = vector.broadcast %348 : i32 to vector<16x128xi32>
    %351 = arith.addi %350, %349 : vector<16x128xi32>
    %c128_i32 = arith.constant 128 : i32
    %352 = arith.muli %arg1, %c128_i32 : i32
    %353 = tpu.iota {dimensions = array<i32: 1>} : vector<16x128xi32>
    %354 = vector.broadcast %352 : i32 to vector<16x128xi32>
    %355 = arith.addi %354, %353 : vector<16x128xi32>
    %356 = arith.cmpi eq, %351, %355 : vector<16x128xi32>
    %cst = arith.constant 1.000000e+10 : f32
    %357 = vector.broadcast %cst : f32 to vector<16x128xf32>
    %358 = arith.select %347, %336, %357 : vector<16x128xi1>, vector<16x128xf32>
    %359 = arith.andi %347, %356 : vector<16x128xi1>
    %cst_11 = arith.constant 1.000000e+10 : f32
    %360 = vector.broadcast %cst_11 : f32 to vector<16x128xf32>
    %361 = arith.addf %358, %360 : vector<16x128xf32>
    %362 = arith.select %359, %361, %358 : vector<16x128xi1>, vector<16x128xf32>
    %c0_12 = arith.constant 0 : index
    %c0_13 = arith.constant 0 : index
    %363 = vector.load %arg8[%c0_12, %c0_13] : memref<16x128xf32, #tpu.memory_space<vmem>>, vector<16x128xf32>
    tpu.vector_store %arg8[%c0_12, %c0_13], %362 {strides = array<i32>} : memref<16x128xf32, #tpu.memory_space<vmem>>, vector<16x128xf32>,
    return
  }
  func.func @transform_0(%arg0: i32, %arg1: i32) -> (i32, i32) {
    %c0_i32 = arith.constant 0 : i32
    %c0_i32_0 = arith.constant 0 : i32
    return %arg0, %c0_i32 : i32, i32
  }
  func.func @transform_1(%arg0: i32, %arg1: i32) -> (i32, i32) {
    %c0_i32 = arith.constant 0 : i32
    %c0_i32_0 = arith.constant 0 : i32
    return %c0_i32, %arg1 : i32, i32
  }
  func.func @transform_2(%arg0: i32, %arg1: i32) -> (i32, i32) {
    %c0_i32 = arith.constant 0 : i32
    %c0_i32_0 = arith.constant 0 : i32
    return %arg0, %c0_i32 : i32, i32
  }
  func.func @transform_3(%arg0: i32, %arg1: i32) -> (i32, i32) {
    %c0_i32 = arith.constant 0 : i32
    %c0_i32_0 = arith.constant 0 : i32
    return %c0_i32, %arg1 : i32, i32
  }
  func.func @transform_4(%arg0: i32, %arg1: i32) -> (i32, i32) {
    %c0_i32 = arith.constant 0 : i32
    %c0_i32_0 = arith.constant 0 : i32
    return %arg0, %c0_i32 : i32, i32
  }
  func.func @transform_5(%arg0: i32, %arg1: i32) -> (i32, i32) {
    %c0_i32 = arith.constant 0 : i32
    %c0_i32_0 = arith.constant 0 : i32
    return %c0_i32, %arg1 : i32, i32
  }
  func.func @transform_6(%arg0: i32, %arg1: i32) -> (i32, i32) {
    %c0_i32 = arith.constant 0 : i32
    return %arg0, %arg1 : i32, i32
  }
}

</mosaic_0001>

<llo_original>
// kernel: _complex_graph_core.2
$region0: #{_complex_graph_core.2}
  #allocation0 [shape = 'u32[]', space=smem, size = 0x4, offset = 0x4, fixed_abs, tag = 'smem constant byte address 0x4 - core index']
  #allocation1 [shape = 'u32[72,128]{1,0:T(1,128)}', space=vmem, size = 0x9000, scoped, tag = 'internal scratch']
  %s0 = inlined_call_operand.vmem [shape: s32[16,1], index: 0, kind: input, shape index: {}]
  %s1 = inlined_call_operand.vmem [shape: f32[16,1], index: 1, kind: input, shape index: {}]
  %s2 = inlined_call_operand.vmem [shape: f32[24,128], index: 2, kind: input, shape index: {}]
  %s3 = inlined_call_operand.vmem [shape: f32[1,128], index: 3, kind: input, shape index: {}]
  %s4 = inlined_call_operand.vmem [shape: f32[1,128], index: 4, kind: input, shape index: {}]
  %s5 = inlined_call_operand.vmem [shape: f32[16,128], index: 5, kind: output, shape index: {}]
  %s6 = sld [smem:[#allocation0]]
  $region30: #{_complex_graph_core.2} parent=0
    _
  %s8 = ssub.s32 1, %s6
  %s9 = scalar_select 0, %s8, %s6
  // Predicated region
  $region2: #{_complex_graph_core.2} parent=0 // pred_check
    _
  $region3: #{_complex_graph_core.2} parent=0 // pred_check_branch
    %11 = sbr.rel (0) target = $region5
  $region4: #{_complex_graph_core.2} parent=0 // pred_region
    _
  $region5: #{_complex_graph_core.2} parent=0 // pred_fallthru
    _
  // Predicated region
  $region6: #{_complex_graph_core.2} parent=0 // pred_check
    _
  $region7: #{_complex_graph_core.2} parent=0 // pred_check_branch
    %13 = sbr.rel (0) target = $region9
  $region8: #{_complex_graph_core.2} parent=0 // pred_region
    _
  $region9: #{_complex_graph_core.2} parent=0 // pred_fallthru
    _
  // Predicated region
  $region10: #{_complex_graph_core.2} parent=0 // pred_check
    _
  $region11: #{_complex_graph_core.2} parent=0 // pred_check_branch
    %15 = sbr.rel (0) target = $region13
  $region12: #{_complex_graph_core.2} parent=0 // pred_region
    _
  $region13: #{_complex_graph_core.2} parent=0 // pred_fallthru
    _
  // Predicated region
  $region14: #{_complex_graph_core.2} parent=0 // pred_check
    _
  $region15: #{_complex_graph_core.2} parent=0 // pred_check_branch
    %17 = sbr.rel (0) target = $region17
  $region16: #{_complex_graph_core.2} parent=0 // pred_region
    _
  $region17: #{_complex_graph_core.2} parent=0 // pred_fallthru
    _
  // Predicated region
  $region18: #{_complex_graph_core.2} parent=0 // pred_check
    _
  $region19: #{_complex_graph_core.2} parent=0 // pred_check_branch
    %19 = sbr.rel (0) target = $region21
  $region20: #{_complex_graph_core.2} parent=0 // pred_region
    _
  $region21: #{_complex_graph_core.2} parent=0 // pred_fallthru
    _
  %v20 = vld [vmem:[%s0] sm:$0xff]
  %v21 = vld [vmem:[%s0 + $0x8] sm:$0xff]
  %v22 = vlaneseq
  %v23 = vand.u32 %v22, 127
  %24 = vset.pattern.permute.xlu0 0
  %25 = vperm.xlu0 %24, %v20
  %v26 = vpop.permute.xlu0 %25
  %27 = vset.pattern.permute.xlu0 0
  %28 = vperm.xlu0 %27, %v21
  %v29 = vpop.permute.xlu0 %28
  %vm30 = vcmp.eq.s32.totalorder %v23, %v26
  %vm31 = vcmp.eq.s32.totalorder %v23, %v29
  %v32 = vsel %vm30, 1, 0
  %v33 = vsel %vm31, 1, 0
  %v34 = vcvt.s32.f32 %v32
  %v35 = vcvt.s32.f32 %v33
  %v36 = vld [vmem:[%s2] sm:$0xff]
  %v37 = vld [vmem:[%s2 + $0x8] sm:$0xff]
  %v38 = vld [vmem:[%s2 + $0x10] sm:$0xff]
  %v39 = vld [vmem:[%s1] sm:$0xff]
  %v40 = vld [vmem:[%s1 + $0x8] sm:$0xff]
  %v41 = vld [vmem:[%s3] sm:$0x1]
  %43 = vset.pattern.permute.xlu0 0
  %44 = vperm.xlu0 %43, %v39
  %v45 = vpop.permute.xlu0 %44
  %48 = vset.pattern.permute.xlu0 0
  %49 = vperm.xlu0 %48, %v40
  %v50 = vpop.permute.xlu0 %49
  %v53 = vperm.slane %v41, 0
  %v55 = vmul.f32 %v45, %v53
  %v56 = vmul.f32 %v50, %v53
  %v57 = vld [vmem:[%s4] sm:$0x1]
  %v59 = vperm.slane %v57, 0
  %v61 = vadd.f32 %v55, %v59
  %v62 = vadd.f32 %v56, %v59
  %v63 = vand.u32 2147483647, %v61
  %vm64 = vcmp.le.f32.partialorder %v63, 0.7853982
  %vm65 = vcmp.lt.s32.totalorder %v61, 0
  %v66 = vand.u32 %v61, 2139095040
  %v67 = vshrl.u32 %v66, 23
  %v68 = vsub.s32 %v67, 127
  %v69 = vand.u32 2147483647, %v61
  %v70 = vand.u32 %v69, 8388607
  %v71 = vor.u32 %v70, 8388608
  %v72 = vsub.s32 0, %v71
  %v73 = vadd.s32 %v68, 1
  %vm74 = vcmp.gt.s32.totalorder %v73, 0
  %v75 = vsel %vm74, %v73, 0
  %v76 = vshrl.u32 %v75, 5
  %v77 = vand.u32 %v75, 31
  %v78 = vsub.s32 32, %v77
  %v79 = vshrl.u32 683565275, %v78
  %v80 = vshll.u32 683565275, %v77
  %v81 = vshrl.u32 2475754826, %v78
  %v82 = vor.u32 %v80, %v81
  %v83 = vshll.u32 2475754826, %v77
  %v84 = vshrl.u32 2131351028, %v78
  %v85 = vor.u32 %v83, %v84
  %v86 = vshll.u32 2131351028, %v77
  %v87 = vshrl.u32 2102212464, %v78
  %v88 = vor.u32 %v86, %v87
  %v89 = vshll.u32 2102212464, %v77
  %v90 = vshrl.u32 920167782, %v78
  %v91 = vor.u32 %v89, %v90
  %v92 = vshll.u32 920167782, %v77
  %v93 = vshrl.u32 1326507024, %v78
  %v94 = vor.u32 %v92, %v93
  %vm95 = vcmp.lt.s32.totalorder %v76, 1
  %vm96 = vcmp.lt.s32.totalorder %v76, 2
  %vm97 = vcmp.lt.s32.totalorder %v76, 3
  %vm98 = vcmp.lt.s32.totalorder %v76, 4
  %v99 = vsel %vm95, %v79, %v82
  %v100 = vsel %vm98, %v88, 2102212464
  %v101 = vsel %vm97, %v85, %v100
  %v102 = vsel %vm96, %v99, %v101
  %v103 = vsel %vm95, %v82, %v85
  %v104 = vsel %vm98, %v91, 920167782
  %v105 = vsel %vm97, %v88, %v104
  %v106 = vsel %vm96, %v103, %v105
  %v107 = vsel %vm95, %v85, %v88
  %v108 = vsel %vm98, %v94, 1326507024
  %v109 = vsel %vm97, %v91, %v108
  %v110 = vsel %vm96, %v107, %v109
  %v111 = vshll.u32 %v71, 8
  %v112 = vand.u32 %v111, 65535
  %v113 = vshrl.u32 %v111, 16
  %v114 = vand.u32 %v110, 65535
  %v115 = vshrl.u32 %v110, 16
  %v116 = vmul.u32 %v112, %v114
  %v117 = vmul.u32 %v112, %v115
  %v118 = vmul.u32 %v113, %v114
  %v119 = vmul.u32 %v113, %v115
  %v120 = vshll.u32 %v117, 16
  %v121 = vshrl.u32 %v117, 16
  %v122 = vshll.u32 %v118, 16
  %v123 = vshrl.u32 %v118, 16
  %vm124 = vc.u32 %v116, %v120
  %v125 = vsel %vm124, 1, 0
  %v126 = vadd.s32 %v116, %v120
  %v127 = vadd.s32 %v119, %v125
  %vm128 = vc.u32 %v126, %v122
  %v129 = vsel %vm128, 1, 0
  %v130 = vadd.s32 %v126, %v122
  %v131 = vadd.s32 %v127, %v129
  %v132 = vadd.s32 %v131, %v121
  %v133 = vadd.s32 %v132, %v123
  %v134 = vand.u32 %v111, 65535
  %v135 = vshrl.u32 %v111, 16
  %v136 = vand.u32 %v106, 65535
  %v137 = vshrl.u32 %v106, 16
  %v138 = vmul.u32 %v134, %v136
  %v139 = vmul.u32 %v134, %v137
  %v140 = vmul.u32 %v135, %v136
  %v141 = vmul.u32 %v135, %v137
  %v142 = vshll.u32 %v139, 16
  %v143 = vshrl.u32 %v139, 16
  %v144 = vshll.u32 %v140, 16
  %v145 = vshrl.u32 %v140, 16
  %vm146 = vc.u32 %v138, %v142
  %v147 = vsel %vm146, 1, 0
  %v148 = vadd.s32 %v138, %v142
  %v149 = vadd.s32 %v141, %v147
  %vm150 = vc.u32 %v148, %v144
  %v151 = vsel %vm150, 1, 0
  %v152 = vadd.s32 %v148, %v144
  %v153 = vadd.s32 %v149, %v151
  %v154 = vadd.s32 %v153, %v143
  %v155 = vadd.s32 %v154, %v145
  %v156 = vmul.u32 %v111, %v102
  %v157 = vadd.s32 %v133, %v152
  %vm158 = vc.u32 %v133, %v152
  %v159 = vadd.s32 %v155, 1
  %v160 = vsel %vm158, %v159, %v155
  %v161 = vadd.s32 %v156, %v160
  %v162 = vadd.s32 %v161, 536870912
  %v163 = vshrl.u32 %v162, 30
  %v164 = vshll.u32 %v163, 30
  %v165 = vsub.s32 %v161, %v164
  %vm166 = vcmp.lt.s32.totalorder %v165, 0
  %v167 = vsub.s32 0, %v165
  %v168 = vsel %vm166, %v167, %v165
  %v169 = vclz %v168
  %v170 = vsub.s32 %v169, 2
  %vm171 = vcmp.gt.s32.totalorder 0, %v170
  %v172 = vsel %vm171, 0, %v170
  %v173 = vsub.s32 32, %v172
  %v174 = vshll.u32 %v165, %v172
  %v175 = vshrl.u32 %v157, %v173
  %v176 = vor.u32 %v174, %v175
  %v177 = vsub.s32 4294967266, %v172
  %v178 = vadd.s32 %v177, 127
  %v179 = vshll.u32 %v178, 23
  %v180 = vor.u32 4788187, %v179
  %v181 = vand.u32 2147483647, %v180
  %v183 = vcvt.s32.f32 %v176
  %v184 = vmul.f32 %v183, %v181
  %v185 = vxor.u32 %v184, 2147483648
  %v186 = vsel %vm65, %v185, %v184
  %v187 = vsub.s32 4, %v163
  %v188 = vsel %vm65, %v187, %v163
  %v189 = vsel %vm64, %v61, %v186
  %v190 = vsel %vm64, 0, %v188
  %v191 = vmul.f32 %v189, %v189
  %v192 = vmul.f32 %v191, -0.001358992
  %v193 = vadd.f32 %v192, 0.041655596
  %v194 = vmul.f32 %v191, %v193
  %v195 = vadd.f32 %v194, -0.4999988
  %v196 = vmul.f32 %v191, %v195
  %v197 = vadd.f32 1.0, %v196
  %v198 = vmul.f32 %v189, %v189
  %v199 = vmul.f32 %v198, -0.00019511016
  %v200 = vadd.f32 %v199, 0.008332121
  %v201 = vmul.f32 %v198, %v200
  %v202 = vadd.f32 %v201, -0.16666654
  %v203 = vmul.f32 %v198, %v202
  %v204 = vadd.f32 %v203, 1.0
  %v205 = vmul.f32 %v204, %v189
  %vm206 = vweird.f32 %v61
  %v207 = vadd.s32 %v190, 3
  %v208 = vand.u32 %v207, 3
  %vm209 = vcmp.lt.s32.totalorder %v208, 2
  %vm210 = vcmp.eq.s32.totalorder %v208, 0
  %v211 = vxor.u32 %v205, 2147483648
  %v212 = vsel %vm210, %v197, %v211
  %vm213 = vcmp.eq.s32.totalorder %v208, 2
  %v214 = vxor.u32 %v197, 2147483648
  %v215 = vsel %vm213, %v214, %v205
  %v216 = vsel %vm209, %v212, %v215
  %v217 = vsel %vm206, nan, %v216
  %v218 = vand.u32 2147483647, %v62
  %vm219 = vcmp.le.f32.partialorder %v218, 0.7853982
  %vm220 = vcmp.lt.s32.totalorder %v62, 0
  %v221 = vand.u32 %v62, 2139095040
  %v222 = vshrl.u32 %v221, 23
  %v223 = vsub.s32 %v222, 127
  %v224 = vand.u32 2147483647, %v62
  %v225 = vand.u32 %v224, 8388607
  %v226 = vor.u32 %v225, 8388608
  %v227 = vsub.s32 0, %v226
  %v228 = vadd.s32 %v223, 1
  %vm229 = vcmp.gt.s32.totalorder %v228, 0
  %v230 = vsel %vm229, %v228, 0
  %v231 = vshrl.u32 %v230, 5
  %v232 = vand.u32 %v230, 31
  %v233 = vsub.s32 32, %v232
  %v234 = vshrl.u32 683565275, %v233
  %v235 = vshll.u32 683565275, %v232
  %v236 = vshrl.u32 2475754826, %v233
  %v237 = vor.u32 %v235, %v236
  %v238 = vshll.u32 2475754826, %v232
  %v239 = vshrl.u32 2131351028, %v233
  %v240 = vor.u32 %v238, %v239
  %v241 = vshll.u32 2131351028, %v232
  %v242 = vshrl.u32 2102212464, %v233
  %v243 = vor.u32 %v241, %v242
  %v244 = vshll.u32 2102212464, %v232
  %v245 = vshrl.u32 920167782, %v233
  %v246 = vor.u32 %v244, %v245
  %v247 = vshll.u32 920167782, %v232
  %v248 = vshrl.u32 1326507024, %v233
  %v249 = vor.u32 %v247, %v248
  %vm250 = vcmp.lt.s32.totalorder %v231, 1
  %vm251 = vcmp.lt.s32.totalorder %v231, 2
  %vm252 = vcmp.lt.s32.totalorder %v231, 3
  %vm253 = vcmp.lt.s32.totalorder %v231, 4
  %v254 = vsel %vm250, %v234, %v237
  %v255 = vsel %vm253, %v243, 2102212464
  %v256 = vsel %vm252, %v240, %v255
  %v257 = vsel %vm251, %v254, %v256
  %v258 = vsel %vm250, %v237, %v240
  %v259 = vsel %vm253, %v246, 920167782
  %v260 = vsel %vm252, %v243, %v259
  %v261 = vsel %vm251, %v258, %v260
  %v262 = vsel %vm250, %v240, %v243
  %v263 = vsel %vm253, %v249, 1326507024
  %v264 = vsel %vm252, %v246, %v263
  %v265 = vsel %vm251, %v262, %v264
  %v266 = vshll.u32 %v226, 8
  %v267 = vand.u32 %v266, 65535
  %v268 = vshrl.u32 %v266, 16
  %v269 = vand.u32 %v265, 65535
  %v270 = vshrl.u32 %v265, 16
  %v271 = vmul.u32 %v267, %v269
  %v272 = vmul.u32 %v267, %v270
  %v273 = vmul.u32 %v268, %v269
  %v274 = vmul.u32 %v268, %v270
  %v275 = vshll.u32 %v272, 16
  %v276 = vshrl.u32 %v272, 16
  %v277 = vshll.u32 %v273, 16
  %v278 = vshrl.u32 %v273, 16
  %vm279 = vc.u32 %v271, %v275
  %v280 = vsel %vm279, 1, 0
  %v281 = vadd.s32 %v271, %v275
  %v282 = vadd.s32 %v274, %v280
  %vm283 = vc.u32 %v281, %v277
  %v284 = vsel %vm283, 1, 0
  %v285 = vadd.s32 %v281, %v277
  %v286 = vadd.s32 %v282, %v284
  %v287 = vadd.s32 %v286, %v276
  %v288 = vadd.s32 %v287, %v278
  %v289 = vand.u32 %v266, 65535
  %v290 = vshrl.u32 %v266, 16
  %v291 = vand.u32 %v261, 65535
  %v292 = vshrl.u32 %v261, 16
  %v293 = vmul.u32 %v289, %v291
  %v294 = vmul.u32 %v289, %v292
  %v295 = vmul.u32 %v290, %v291
  %v296 = vmul.u32 %v290, %v292
  %v297 = vshll.u32 %v294, 16
  %v298 = vshrl.u32 %v294, 16
  %v299 = vshll.u32 %v295, 16
  %v300 = vshrl.u32 %v295, 16
  %vm301 = vc.u32 %v293, %v297
  %v302 = vsel %vm301, 1, 0
  %v303 = vadd.s32 %v293, %v297
  %v304 = vadd.s32 %v296, %v302
  %vm305 = vc.u32 %v303, %v299
  %v306 = vsel %vm305, 1, 0
  %v307 = vadd.s32 %v303, %v299
  %v308 = vadd.s32 %v304, %v306
  %v309 = vadd.s32 %v308, %v298
  %v310 = vadd.s32 %v309, %v300
  %v311 = vmul.u32 %v266, %v257
  %v312 = vadd.s32 %v288, %v307
  %vm313 = vc.u32 %v288, %v307
  %v314 = vadd.s32 %v310, 1
  %v315 = vsel %vm313, %v314, %v310
  %v316 = vadd.s32 %v311, %v315
  %v317 = vadd.s32 %v316, 536870912
  %v318 = vshrl.u32 %v317, 30
  %v319 = vshll.u32 %v318, 30
  %v320 = vsub.s32 %v316, %v319
  %vm321 = vcmp.lt.s32.totalorder %v320, 0
  %v322 = vsub.s32 0, %v320
  %v323 = vsel %vm321, %v322, %v320
  %v324 = vclz %v323
  %v325 = vsub.s32 %v324, 2
  %vm326 = vcmp.gt.s32.totalorder 0, %v325
  %v327 = vsel %vm326, 0, %v325
  %v328 = vsub.s32 32, %v327
  %v329 = vshll.u32 %v320, %v327
  %v330 = vshrl.u32 %v312, %v328
  %v331 = vor.u32 %v329, %v330
  %v332 = vsub.s32 4294967266, %v327
  %v333 = vadd.s32 %v332, 127
  %v334 = vshll.u32 %v333, 23
  %v335 = vor.u32 4788187, %v334
  %v336 = vand.u32 2147483647, %v335
  %v338 = vcvt.s32.f32 %v331
  %v339 = vmul.f32 %v338, %v336
  %v340 = vxor.u32 %v339, 2147483648
  %v341 = vsel %vm220, %v340, %v339
  %v342 = vsub.s32 4, %v318
  %v343 = vsel %vm220, %v342, %v318
  %v344 = vsel %vm219, %v62, %v341
  %v345 = vsel %vm219, 0, %v343
  %v346 = vmul.f32 %v344, %v344
  %v347 = vmul.f32 %v346, -0.001358992
  %v348 = vadd.f32 %v347, 0.041655596
  %v349 = vmul.f32 %v346, %v348
  %v350 = vadd.f32 %v349, -0.4999988
  %v351 = vmul.f32 %v346, %v350
  %v352 = vadd.f32 1.0, %v351
  %v353 = vmul.f32 %v344, %v344
  %v354 = vmul.f32 %v353, -0.00019511016
  %v355 = vadd.f32 %v354, 0.008332121
  %v356 = vmul.f32 %v353, %v355
  %v357 = vadd.f32 %v356, -0.16666654
  %v358 = vmul.f32 %v353, %v357
  %v359 = vadd.f32 %v358, 1.0
  %v360 = vmul.f32 %v359, %v344
  %vm361 = vweird.f32 %v62
  %v362 = vadd.s32 %v345, 3
  %v363 = vand.u32 %v362, 3
  %vm364 = vcmp.lt.s32.totalorder %v363, 2
  %vm365 = vcmp.eq.s32.totalorder %v363, 0
  %v366 = vxor.u32 %v360, 2147483648
  %v367 = vsel %vm365, %v352, %v366
  %vm368 = vcmp.eq.s32.totalorder %v363, 2
  %v369 = vxor.u32 %v352, 2147483648
  %v370 = vsel %vm368, %v369, %v360
  %v371 = vsel %vm364, %v367, %v370
  %v372 = vsel %vm361, nan, %v371
  %vm373 = vcmask 195584
  %v375 = vsel %vm373, %v34, 0
  %v378 = vsel %vm373, %v35, 0
  %380 = vmatpush.msra.mxu0 0.0
  %381 = vmatpush.msra.mxu0 0.0
  %382 = vmatpush.msra.mxu0 0.0
  %383 = vmatpush.msra.mxu0 0.0
  %384 = vmatpush.msra.mxu0 0.0
  %385 = vmatpush.msra.mxu0 0.0
  %386 = vmatpush.msra.mxu0 0.0
  %387 = vmatpush.msra.mxu0 0.0
  %388 = vmatpush.msra.mxu0 0.0
  %389 = vmatpush.msra.mxu0 0.0
  %390 = vmatpush.msra.mxu0 0.0
  %391 = vmatpush.msra.mxu0 0.0
  %392 = vmatpush.msra.mxu0 0.0
  %393 = vmatpush.msra.mxu0 %v38
  %394 = vmatpush.msra.mxu0 %v37
  %395 = vmatpush.msra.mxu0 %v36
  %396 = vmatmul.f32.gmra.mxu0 %v375
  %v397 = vpop.f32.mrf.mxu0
  %v398 = vadd.f32 %v217, %v397
  %399 = vmatmul.f32.gmra.mxu0 %v378
  %v400 = vpop.f32.mrf.mxu0
  %v401 = vadd.f32 %v372, %v400
  %402 = vdwg.mxu0
  %403 = vst [vmem:[%s5] sm:$0xff] %v398
  %404 = vst [vmem:[%s5 + $0x8] sm:$0xff] %v401
  // Predicated region
  $region22: #{_complex_graph_core.2} parent=0 // pred_check
    _
  $region23: #{_complex_graph_core.2} parent=0 // pred_check_branch
    %406 = sbr.rel (0) target = $region25
  $region24: #{_complex_graph_core.2} parent=0 // pred_region
    _
  $region25: #{_complex_graph_core.2} parent=0 // pred_fallthru
    _
  // Predicated region
  $region26: #{_complex_graph_core.2} parent=0 // pred_check
    _
  $region27: #{_complex_graph_core.2} parent=0 // pred_check_branch
    %408 = sbr.rel (0) target = $region29
  $region28: #{_complex_graph_core.2} parent=0 // pred_region
    _
  $region29: #{_complex_graph_core.2} parent=0 // pred_fallthru
    _

// kernel: _complex_graph_core.3
$region0: #{_complex_graph_core.3}
  #allocation0 [shape = 'u32[]', space=smem, size = 0x4, offset = 0x4, fixed_abs, tag = 'smem constant byte address 0x4 - core index']
  #allocation1 [shape = 'u32[72,128]{1,0:T(1,128)}', space=vmem, size = 0x9000, scoped, tag = 'internal scratch']
  %s0 = inlined_call_operand.vmem [shape: f32[16,12], index: 0, kind: input, shape index: {}]
  %s1 = inlined_call_operand.vmem [shape: f32[12,128], index: 1, kind: input, shape index: {}]
  %s2 = inlined_call_operand.vmem [shape: s32[16,1], index: 2, kind: input, shape index: {}]
  %s3 = inlined_call_operand.vmem [shape: s32[1,128], index: 3, kind: input, shape index: {}]
  %s4 = inlined_call_operand.vmem [shape: s32[16,1], index: 4, kind: input, shape index: {}]
  %s5 = inlined_call_operand.vmem [shape: s32[1,128], index: 5, kind: input, shape index: {}]
  %s6 = inlined_call_operand.vmem [shape: f32[16,128], index: 6, kind: output, shape index: {}]
  %s7 = sld [smem:[#allocation0]]
  $region34: #{_complex_graph_core.3} parent=0
    _
  %s9 = ssub.s32 1, %s7
  %s10 = scalar_select 0, %s9, %s7
  // Predicated region
  $region2: #{_complex_graph_core.3} parent=0 // pred_check
    _
  $region3: #{_complex_graph_core.3} parent=0 // pred_check_branch
    %12 = sbr.rel (0) target = $region5
  $region4: #{_complex_graph_core.3} parent=0 // pred_region
    _
  $region5: #{_complex_graph_core.3} parent=0 // pred_fallthru
    _
  // Predicated region
  $region6: #{_complex_graph_core.3} parent=0 // pred_check
    _
  $region7: #{_complex_graph_core.3} parent=0 // pred_check_branch
    %14 = sbr.rel (0) target = $region9
  $region8: #{_complex_graph_core.3} parent=0 // pred_region
    _
  $region9: #{_complex_graph_core.3} parent=0 // pred_fallthru
    _
  // Predicated region
  $region10: #{_complex_graph_core.3} parent=0 // pred_check
    _
  $region11: #{_complex_graph_core.3} parent=0 // pred_check_branch
    %16 = sbr.rel (0) target = $region13
  $region12: #{_complex_graph_core.3} parent=0 // pred_region
    _
  $region13: #{_complex_graph_core.3} parent=0 // pred_fallthru
    _
  // Predicated region
  $region14: #{_complex_graph_core.3} parent=0 // pred_check
    _
  $region15: #{_complex_graph_core.3} parent=0 // pred_check_branch
    %18 = sbr.rel (0) target = $region17
  $region16: #{_complex_graph_core.3} parent=0 // pred_region
    _
  $region17: #{_complex_graph_core.3} parent=0 // pred_fallthru
    _
  // Predicated region
  $region18: #{_complex_graph_core.3} parent=0 // pred_check
    _
  $region19: #{_complex_graph_core.3} parent=0 // pred_check_branch
    %20 = sbr.rel (0) target = $region21
  $region20: #{_complex_graph_core.3} parent=0 // pred_region
    _
  $region21: #{_complex_graph_core.3} parent=0 // pred_fallthru
    _
  // Predicated region
  $region22: #{_complex_graph_core.3} parent=0 // pred_check
    _
  $region23: #{_complex_graph_core.3} parent=0 // pred_check_branch
    %22 = sbr.rel (0) target = $region25
  $region24: #{_complex_graph_core.3} parent=0 // pred_region
    _
  $region25: #{_complex_graph_core.3} parent=0 // pred_fallthru
    _
  %v23 = vld [vmem:[%s0] sm:$0xff]
  %v24 = vld [vmem:[%s0 + $0x8] sm:$0xff]
  %v25 = vld [vmem:[%s1] sm:$0xff]
  %v26 = vld [vmem:[%s1 + $0x8] sm:$0xf]
  %v27 = vmul.f32 %v25, %v25
  %v29 = vrot.slane %v27, 1
  %v31 = vadd.f32 %v27, %v29
  %v32 = vrot.slane %v27, 2
  %v34 = vadd.f32 %v31, %v32
  %v35 = vmul.f32 %v26, %v26
  %v37 = vrot.slane %v35, 2
  %v39 = vadd.f32 %v31, %v37
  %v40 = vrot.slane %v35, 1
  %v42 = vadd.f32 %v35, %v40
  %v43 = vadd.f32 %v42, %v37
  %v44 = vmul.f32 %v23, %v23
  %v45 = vmul.f32 %v24, %v24
  %48 = vrot.lane.b32.xlu0 %v44, 127
  %v49 = vpop.permute.xlu0 %48
  %50 = vrot.lane.b32.xlu0 %v45, 127
  %v51 = vpop.permute.xlu0 %50
  %v54 = vadd.f32 %v44, %v49
  %v55 = vadd.f32 %v45, %v51
  %56 = vrot.lane.b32.xlu0 %v44, 126
  %v57 = vpop.permute.xlu0 %56
  %58 = vrot.lane.b32.xlu0 %v45, 126
  %v59 = vpop.permute.xlu0 %58
  %v62 = vadd.f32 %v54, %v57
  %v63 = vadd.f32 %v55, %v59
  %65 = vset.pattern.permute.xlu0 0
  %66 = vperm.xlu0 %65, %v23
  %v67 = vpop.permute.xlu0 %66
  %70 = vset.pattern.permute.xlu0 0
  %71 = vperm.xlu0 %70, %v24
  %v72 = vpop.permute.xlu0 %71
  %v74 = vperm.slane %v25, 0
  %v75 = vmul.f32 %v67, %v74
  %v76 = vmul.f32 %v72, %v74
  %77 = vset.pattern.permute.xlu0 1
  %78 = vperm.xlu0 %77, %v23
  %v79 = vpop.permute.xlu0 %78
  %81 = vset.pattern.permute.xlu0 1
  %82 = vperm.xlu0 %81, %v24
  %v83 = vpop.permute.xlu0 %82
  %v85 = vperm.slane %v25, 1
  %v86 = vmul.f32 %v79, %v85
  %v87 = vmul.f32 %v83, %v85
  %v88 = vadd.f32 %v75, %v86
  %v89 = vadd.f32 %v76, %v87
  %90 = vset.pattern.permute.xlu0 2
  %91 = vperm.xlu0 %90, %v23
  %v92 = vpop.permute.xlu0 %91
  %94 = vset.pattern.permute.xlu0 2
  %95 = vperm.xlu0 %94, %v24
  %v96 = vpop.permute.xlu0 %95
  %v98 = vperm.slane %v25, 2
  %v99 = vmul.f32 %v92, %v98
  %v100 = vmul.f32 %v96, %v98
  %v101 = vadd.f32 %v88, %v99
  %v102 = vadd.f32 %v89, %v100
  %104 = vset.pattern.permute.xlu0 0
  %105 = vperm.xlu0 %104, %v62
  %v106 = vpop.permute.xlu0 %105
  %109 = vset.pattern.permute.xlu0 0
  %110 = vperm.xlu0 %109, %v63
  %v111 = vpop.permute.xlu0 %110
  %v113 = vperm.slane %v34, 0
  %v114 = vadd.f32 %v106, %v113
  %v115 = vadd.f32 %v111, %v113
  %v116 = vadd.f32 %v101, %v101
  %v117 = vadd.f32 %v102, %v102
  %v118 = vsub.f32 %v114, %v116
  %v119 = vsub.f32 %v115, %v117
  %v120 = vperm.slane %v25, 3
  %v121 = vmul.f32 %v67, %v120
  %v122 = vmul.f32 %v72, %v120
  %v123 = vperm.slane %v25, 4
  %v124 = vmul.f32 %v79, %v123
  %v125 = vmul.f32 %v83, %v123
  %v126 = vadd.f32 %v121, %v124
  %v127 = vadd.f32 %v122, %v125
  %v128 = vperm.slane %v25, 5
  %v129 = vmul.f32 %v92, %v128
  %v130 = vmul.f32 %v96, %v128
  %v131 = vadd.f32 %v126, %v129
  %v132 = vadd.f32 %v127, %v130
  %v133 = vperm.slane %v34, 3
  %v134 = vadd.f32 %v106, %v133
  %v135 = vadd.f32 %v111, %v133
  %v136 = vadd.f32 %v131, %v131
  %v137 = vadd.f32 %v132, %v132
  %v138 = vsub.f32 %v134, %v136
  %v139 = vsub.f32 %v135, %v137
  %v140 = vmin.f32 %v118, %v138
  %v141 = vmin.f32 %v119, %v139
  %v142 = vperm.slane %v25, 6
  %v143 = vmul.f32 %v67, %v142
  %v144 = vmul.f32 %v72, %v142
  %v145 = vperm.slane %v25, 7
  %v146 = vmul.f32 %v79, %v145
  %v147 = vmul.f32 %v83, %v145
  %v148 = vadd.f32 %v143, %v146
  %v149 = vadd.f32 %v144, %v147
  %v150 = vperm.slane %v26, 0
  %v151 = vmul.f32 %v92, %v150
  %v152 = vmul.f32 %v96, %v150
  %v153 = vadd.f32 %v148, %v151
  %v154 = vadd.f32 %v149, %v152
  %v155 = vperm.slane %v39, 6
  %v156 = vadd.f32 %v106, %v155
  %v157 = vadd.f32 %v111, %v155
  %v158 = vadd.f32 %v153, %v153
  %v159 = vadd.f32 %v154, %v154
  %v160 = vsub.f32 %v156, %v158
  %v161 = vsub.f32 %v157, %v159
  %v162 = vmin.f32 %v140, %v160
  %v163 = vmin.f32 %v141, %v161
  %v164 = vperm.slane %v26, 1
  %v165 = vmul.f32 %v67, %v164
  %v166 = vmul.f32 %v72, %v164
  %v167 = vperm.slane %v26, 2
  %v168 = vmul.f32 %v79, %v167
  %v169 = vmul.f32 %v83, %v167
  %v170 = vadd.f32 %v165, %v168
  %v171 = vadd.f32 %v166, %v169
  %v172 = vperm.slane %v26, 3
  %v173 = vmul.f32 %v92, %v172
  %v174 = vmul.f32 %v96, %v172
  %v175 = vadd.f32 %v170, %v173
  %v176 = vadd.f32 %v171, %v174
  %v177 = vperm.slane %v43, 1
  %v178 = vadd.f32 %v106, %v177
  %v179 = vadd.f32 %v111, %v177
  %v180 = vadd.f32 %v175, %v175
  %v181 = vadd.f32 %v176, %v176
  %v182 = vsub.f32 %v178, %v180
  %v183 = vsub.f32 %v179, %v181
  %v184 = vmin.f32 %v162, %v182
  %v185 = vmin.f32 %v163, %v183
  %186 = vset.pattern.permute.xlu0 3
  %187 = vperm.xlu0 %186, %v23
  %v188 = vpop.permute.xlu0 %187
  %190 = vset.pattern.permute.xlu0 3
  %191 = vperm.xlu0 %190, %v24
  %v192 = vpop.permute.xlu0 %191
  %v194 = vmul.f32 %v188, %v74
  %v195 = vmul.f32 %v192, %v74
  %196 = vset.pattern.permute.xlu0 4
  %197 = vperm.xlu0 %196, %v23
  %v198 = vpop.permute.xlu0 %197
  %200 = vset.pattern.permute.xlu0 4
  %201 = vperm.xlu0 %200, %v24
  %v202 = vpop.permute.xlu0 %201
  %v204 = vmul.f32 %v198, %v85
  %v205 = vmul.f32 %v202, %v85
  %v206 = vadd.f32 %v194, %v204
  %v207 = vadd.f32 %v195, %v205
  %208 = vset.pattern.permute.xlu0 5
  %209 = vperm.xlu0 %208, %v23
  %v210 = vpop.permute.xlu0 %209
  %212 = vset.pattern.permute.xlu0 5
  %213 = vperm.xlu0 %212, %v24
  %v214 = vpop.permute.xlu0 %213
  %v216 = vmul.f32 %v210, %v98
  %v217 = vmul.f32 %v214, %v98
  %v218 = vadd.f32 %v206, %v216
  %v219 = vadd.f32 %v207, %v217
  %220 = vset.pattern.permute.xlu0 3
  %221 = vperm.xlu0 %220, %v62
  %v222 = vpop.permute.xlu0 %221
  %224 = vset.pattern.permute.xlu0 3
  %225 = vperm.xlu0 %224, %v63
  %v226 = vpop.permute.xlu0 %225
  %v228 = vadd.f32 %v222, %v113
  %v229 = vadd.f32 %v226, %v113
  %v230 = vadd.f32 %v218, %v218
  %v231 = vadd.f32 %v219, %v219
  %v232 = vsub.f32 %v228, %v230
  %v233 = vsub.f32 %v229, %v231
  %v234 = vmin.f32 %v184, %v232
  %v235 = vmin.f32 %v185, %v233
  %v236 = vmul.f32 %v188, %v120
  %v237 = vmul.f32 %v192, %v120
  %v238 = vmul.f32 %v198, %v123
  %v239 = vmul.f32 %v202, %v123
  %v240 = vadd.f32 %v236, %v238
  %v241 = vadd.f32 %v237, %v239
  %v242 = vmul.f32 %v210, %v128
  %v243 = vmul.f32 %v214, %v128
  %v244 = vadd.f32 %v240, %v242
  %v245 = vadd.f32 %v241, %v243
  %v246 = vadd.f32 %v222, %v133
  %v247 = vadd.f32 %v226, %v133
  %v248 = vadd.f32 %v244, %v244
  %v249 = vadd.f32 %v245, %v245
  %v250 = vsub.f32 %v246, %v248
  %v251 = vsub.f32 %v247, %v249
  %v252 = vmin.f32 %v234, %v250
  %v253 = vmin.f32 %v235, %v251
  %v254 = vmul.f32 %v188, %v142
  %v255 = vmul.f32 %v192, %v142
  %v256 = vmul.f32 %v198, %v145
  %v257 = vmul.f32 %v202, %v145
  %v258 = vadd.f32 %v254, %v256
  %v259 = vadd.f32 %v255, %v257
  %v260 = vmul.f32 %v210, %v150
  %v261 = vmul.f32 %v214, %v150
  %v262 = vadd.f32 %v258, %v260
  %v263 = vadd.f32 %v259, %v261
  %v264 = vadd.f32 %v222, %v155
  %v265 = vadd.f32 %v226, %v155
  %v266 = vadd.f32 %v262, %v262
  %v267 = vadd.f32 %v263, %v263
  %v268 = vsub.f32 %v264, %v266
  %v269 = vsub.f32 %v265, %v267
  %v270 = vmin.f32 %v252, %v268
  %v271 = vmin.f32 %v253, %v269
  %v272 = vmul.f32 %v188, %v164
  %v273 = vmul.f32 %v192, %v164
  %v274 = vmul.f32 %v198, %v167
  %v275 = vmul.f32 %v202, %v167
  %v276 = vadd.f32 %v272, %v274
  %v277 = vadd.f32 %v273, %v275
  %v278 = vmul.f32 %v210, %v172
  %v279 = vmul.f32 %v214, %v172
  %v280 = vadd.f32 %v276, %v278
  %v281 = vadd.f32 %v277, %v279
  %v282 = vadd.f32 %v222, %v177
  %v283 = vadd.f32 %v226, %v177
  %v284 = vadd.f32 %v280, %v280
  %v285 = vadd.f32 %v281, %v281
  %v286 = vsub.f32 %v282, %v284
  %v287 = vsub.f32 %v283, %v285
  %v288 = vmin.f32 %v270, %v286
  %v289 = vmin.f32 %v271, %v287
  %290 = vset.pattern.permute.xlu0 6
  %291 = vperm.xlu0 %290, %v23
  %v292 = vpop.permute.xlu0 %291
  %294 = vset.pattern.permute.xlu0 6
  %295 = vperm.xlu0 %294, %v24
  %v296 = vpop.permute.xlu0 %295
  %v298 = vmul.f32 %v292, %v74
  %v299 = vmul.f32 %v296, %v74
  %300 = vset.pattern.permute.xlu0 7
  %301 = vperm.xlu0 %300, %v23
  %v302 = vpop.permute.xlu0 %301
  %304 = vset.pattern.permute.xlu0 7
  %305 = vperm.xlu0 %304, %v24
  %v306 = vpop.permute.xlu0 %305
  %v308 = vmul.f32 %v302, %v85
  %v309 = vmul.f32 %v306, %v85
  %v310 = vadd.f32 %v298, %v308
  %v311 = vadd.f32 %v299, %v309
  %312 = vset.pattern.permute.xlu0 8
  %313 = vperm.xlu0 %312, %v23
  %v314 = vpop.permute.xlu0 %313
  %316 = vset.pattern.permute.xlu0 8
  %317 = vperm.xlu0 %316, %v24
  %v318 = vpop.permute.xlu0 %317
  %v320 = vmul.f32 %v314, %v98
  %v321 = vmul.f32 %v318, %v98
  %v322 = vadd.f32 %v310, %v320
  %v323 = vadd.f32 %v311, %v321
  %324 = vset.pattern.permute.xlu0 6
  %325 = vperm.xlu0 %324, %v62
  %v326 = vpop.permute.xlu0 %325
  %328 = vset.pattern.permute.xlu0 6
  %329 = vperm.xlu0 %328, %v63
  %v330 = vpop.permute.xlu0 %329
  %v332 = vadd.f32 %v326, %v113
  %v333 = vadd.f32 %v330, %v113
  %v334 = vadd.f32 %v322, %v322
  %v335 = vadd.f32 %v323, %v323
  %v336 = vsub.f32 %v332, %v334
  %v337 = vsub.f32 %v333, %v335
  %v338 = vmin.f32 %v288, %v336
  %v339 = vmin.f32 %v289, %v337
  %v340 = vmul.f32 %v292, %v120
  %v341 = vmul.f32 %v296, %v120
  %v342 = vmul.f32 %v302, %v123
  %v343 = vmul.f32 %v306, %v123
  %v344 = vadd.f32 %v340, %v342
  %v345 = vadd.f32 %v341, %v343
  %v346 = vmul.f32 %v314, %v128
  %v347 = vmul.f32 %v318, %v128
  %v348 = vadd.f32 %v344, %v346
  %v349 = vadd.f32 %v345, %v347
  %v350 = vadd.f32 %v326, %v133
  %v351 = vadd.f32 %v330, %v133
  %v352 = vadd.f32 %v348, %v348
  %v353 = vadd.f32 %v349, %v349
  %v354 = vsub.f32 %v350, %v352
  %v355 = vsub.f32 %v351, %v353
  %v356 = vmin.f32 %v338, %v354
  %v357 = vmin.f32 %v339, %v355
  %v358 = vmul.f32 %v292, %v142
  %v359 = vmul.f32 %v296, %v142
  %v360 = vmul.f32 %v302, %v145
  %v361 = vmul.f32 %v306, %v145
  %v362 = vadd.f32 %v358, %v360
  %v363 = vadd.f32 %v359, %v361
  %v364 = vmul.f32 %v314, %v150
  %v365 = vmul.f32 %v318, %v150
  %v366 = vadd.f32 %v362, %v364
  %v367 = vadd.f32 %v363, %v365
  %v368 = vadd.f32 %v326, %v155
  %v369 = vadd.f32 %v330, %v155
  %v370 = vadd.f32 %v366, %v366
  %v371 = vadd.f32 %v367, %v367
  %v372 = vsub.f32 %v368, %v370
  %v373 = vsub.f32 %v369, %v371
  %v374 = vmin.f32 %v356, %v372
  %v375 = vmin.f32 %v357, %v373
  %v376 = vmul.f32 %v292, %v164
  %v377 = vmul.f32 %v296, %v164
  %v378 = vmul.f32 %v302, %v167
  %v379 = vmul.f32 %v306, %v167
  %v380 = vadd.f32 %v376, %v378
  %v381 = vadd.f32 %v377, %v379
  %v382 = vmul.f32 %v314, %v172
  %v383 = vmul.f32 %v318, %v172
  %v384 = vadd.f32 %v380, %v382
  %v385 = vadd.f32 %v381, %v383
  %v386 = vadd.f32 %v326, %v177
  %v387 = vadd.f32 %v330, %v177
  %v388 = vadd.f32 %v384, %v384
  %v389 = vadd.f32 %v385, %v385
  %v390 = vsub.f32 %v386, %v388
  %v391 = vsub.f32 %v387, %v389
  %v392 = vmin.f32 %v374, %v390
  %v393 = vmin.f32 %v375, %v391
  %394 = vset.pattern.permute.xlu0 9
  %395 = vperm.xlu0 %394, %v23
  %v396 = vpop.permute.xlu0 %395
  %398 = vset.pattern.permute.xlu0 9
  %399 = vperm.xlu0 %398, %v24
  %v400 = vpop.permute.xlu0 %399
  %v402 = vmul.f32 %v396, %v74
  %v403 = vmul.f32 %v400, %v74
  %404 = vset.pattern.permute.xlu0 10
  %405 = vperm.xlu0 %404, %v23
  %v406 = vpop.permute.xlu0 %405
  %408 = vset.pattern.permute.xlu0 10
  %409 = vperm.xlu0 %408, %v24
  %v410 = vpop.permute.xlu0 %409
  %v412 = vmul.f32 %v406, %v85
  %v413 = vmul.f32 %v410, %v85
  %v414 = vadd.f32 %v402, %v412
  %v415 = vadd.f32 %v403, %v413
  %416 = vset.pattern.permute.xlu0 11
  %417 = vperm.xlu0 %416, %v23
  %v418 = vpop.permute.xlu0 %417
  %420 = vset.pattern.permute.xlu0 11
  %421 = vperm.xlu0 %420, %v24
  %v422 = vpop.permute.xlu0 %421
  %v424 = vmul.f32 %v418, %v98
  %v425 = vmul.f32 %v422, %v98
  %v426 = vadd.f32 %v414, %v424
  %v427 = vadd.f32 %v415, %v425
  %428 = vset.pattern.permute.xlu0 9
  %429 = vperm.xlu0 %428, %v62
  %v430 = vpop.permute.xlu0 %429
  %432 = vset.pattern.permute.xlu0 9
  %433 = vperm.xlu0 %432, %v63
  %v434 = vpop.permute.xlu0 %433
  %v436 = vadd.f32 %v430, %v113
  %v437 = vadd.f32 %v434, %v113
  %v438 = vadd.f32 %v426, %v426
  %v439 = vadd.f32 %v427, %v427
  %v440 = vsub.f32 %v436, %v438
  %v441 = vsub.f32 %v437, %v439
  %v442 = vmin.f32 %v392, %v440
  %v443 = vmin.f32 %v393, %v441
  %v444 = vmul.f32 %v396, %v120
  %v445 = vmul.f32 %v400, %v120
  %v446 = vmul.f32 %v406, %v123
  %v447 = vmul.f32 %v410, %v123
  %v448 = vadd.f32 %v444, %v446
  %v449 = vadd.f32 %v445, %v447
  %v450 = vmul.f32 %v418, %v128
  %v451 = vmul.f32 %v422, %v128
  %v452 = vadd.f32 %v448, %v450
  %v453 = vadd.f32 %v449, %v451
  %v454 = vadd.f32 %v430, %v133
  %v455 = vadd.f32 %v434, %v133
  %v456 = vadd.f32 %v452, %v452
  %v457 = vadd.f32 %v453, %v453
  %v458 = vsub.f32 %v454, %v456
  %v459 = vsub.f32 %v455, %v457
  %v460 = vmin.f32 %v442, %v458
  %v461 = vmin.f32 %v443, %v459
  %v462 = vmul.f32 %v396, %v142
  %v463 = vmul.f32 %v400, %v142
  %v464 = vmul.f32 %v406, %v145
  %v465 = vmul.f32 %v410, %v145
  %v466 = vadd.f32 %v462, %v464
  %v467 = vadd.f32 %v463, %v465
  %v468 = vmul.f32 %v418, %v150
  %v469 = vmul.f32 %v422, %v150
  %v470 = vadd.f32 %v466, %v468
  %v471 = vadd.f32 %v467, %v469
  %v472 = vadd.f32 %v430, %v155
  %v473 = vadd.f32 %v434, %v155
  %v474 = vadd.f32 %v470, %v470
  %v475 = vadd.f32 %v471, %v471
  %v476 = vsub.f32 %v472, %v474
  %v477 = vsub.f32 %v473, %v475
  %v478 = vmin.f32 %v460, %v476
  %v479 = vmin.f32 %v461, %v477
  %v480 = vmul.f32 %v396, %v164
  %v481 = vmul.f32 %v400, %v164
  %v482 = vmul.f32 %v406, %v167
  %v483 = vmul.f32 %v410, %v167
  %v484 = vadd.f32 %v480, %v482
  %v485 = vadd.f32 %v481, %v483
  %v486 = vmul.f32 %v418, %v172
  %v487 = vmul.f32 %v422, %v172
  %v488 = vadd.f32 %v484, %v486
  %v489 = vadd.f32 %v485, %v487
  %v490 = vadd.f32 %v430, %v177
  %v491 = vadd.f32 %v434, %v177
  %v492 = vadd.f32 %v488, %v488
  %v493 = vadd.f32 %v489, %v489
  %v494 = vsub.f32 %v490, %v492
  %v495 = vsub.f32 %v491, %v493
  %v496 = vmin.f32 %v478, %v494
  %v497 = vmin.f32 %v479, %v495
  %v498 = vld [vmem:[%s2] sm:$0xff]
  %v499 = vld [vmem:[%s2 + $0x8] sm:$0xff]
  %v500 = vld [vmem:[%s3] sm:$0x1]
  %501 = vset.pattern.permute.xlu0 0
  %502 = vperm.xlu0 %501, %v498
  %v503 = vpop.permute.xlu0 %502
  %504 = vset.pattern.permute.xlu0 0
  %505 = vperm.xlu0 %504, %v499
  %v506 = vpop.permute.xlu0 %505
  %v507 = vperm.slane %v500, 0
  %vm508 = vcmp.eq.s32.totalorder %v503, %v507
  %vm509 = vcmp.eq.s32.totalorder %v506, %v507
  %v510 = vld [vmem:[%s4] sm:$0xff]
  %v511 = vld [vmem:[%s4 + $0x8] sm:$0xff]
  %v512 = vld [vmem:[%s5] sm:$0x1]
  %513 = vset.pattern.permute.xlu0 0
  %514 = vperm.xlu0 %513, %v510
  %v515 = vpop.permute.xlu0 %514
  %516 = vset.pattern.permute.xlu0 0
  %517 = vperm.xlu0 %516, %v511
  %v518 = vpop.permute.xlu0 %517
  %v519 = vperm.slane %v512, 0
  %vm520 = vcmp.eq.s32.totalorder %v515, %v519
  %vm521 = vcmp.eq.s32.totalorder %v518, %v519
  %vm522 = vmand %vm508, %vm520
  %vm523 = vmand %vm509, %vm521
  %s524 = smul.u32 0, 16
  %v525 = vlaneseq
  %v526 = vshrl.u32 %v525, 7
  %v527 = vadd.s32 %v526, 8
  %v528 = vstv %s524
  %v529 = vadd.s32 %v528, %v526
  %v530 = vadd.s32 %v528, %v527
  %s531 = smul.u32 0, 128
  %v532 = vlaneseq
  %v533 = vand.u32 %v532, 127
  %v534 = vstv %s531
  %v535 = vadd.s32 %v534, %v533
  %vm536 = vcmp.eq.s32.totalorder %v529, %v535
  %vm537 = vcmp.eq.s32.totalorder %v530, %v535
  %v538 = vsel %vm522, %v496, 1e+10
  %v539 = vsel %vm523, %v497, 1e+10
  %vm540 = vmand %vm522, %vm536
  %vm541 = vmand %vm523, %vm537
  %v542 = vadd.f32 %v538, 1e+10
  %v543 = vadd.f32 %v539, 1e+10
  %v544 = vsel %vm540, %v542, %v538
  %v545 = vsel %vm541, %v543, %v539
  %546 = vst [vmem:[%s6] sm:$0xff] %v544
  %547 = vst [vmem:[%s6 + $0x8] sm:$0xff] %v545
  // Predicated region
  $region26: #{_complex_graph_core.3} parent=0 // pred_check
    _
  $region27: #{_complex_graph_core.3} parent=0 // pred_check_branch
    %549 = sbr.rel (0) target = $region29
  $region28: #{_complex_graph_core.3} parent=0 // pred_region
    _
  $region29: #{_complex_graph_core.3} parent=0 // pred_fallthru
    _
  // Predicated region
  $region30: #{_complex_graph_core.3} parent=0 // pred_check
    _
  $region31: #{_complex_graph_core.3} parent=0 // pred_check_branch
    %551 = sbr.rel (0) target = $region33
  $region32: #{_complex_graph_core.3} parent=0 // pred_region
    _
  $region33: #{_complex_graph_core.3} parent=0 // pred_fallthru
    _

</llo_original>
